<compile_context>
chip_gen: v7x
topology: tpu7x:2x2x1
jax: 0.10.0
libtpu: 0.0.40
codegen_flags: <defaults>
</compile_context>

<pallas_src>
import jax
import jax.numpy as jnp
from jax.experimental import pallas as pl
from jax.experimental.pallas import tpu as pltpu


def _round_up(x, m):
    return ((x + m - 1) // m) * m


def _conv1d_kernel(pk_ref, wc_ref, bc_ref, w1_ref, b1_ref, w2_ref, b2_ref,
                   o_ref):
    # pk_ref: (2*Lp, TB, CKp) im2col rows; pk[2t] / pk[2t+1] are the even/odd
    #         conv positions feeding MaxPool window t.
    # wc_ref: (CKp, 64)      conv weight (zero-padded contraction rows)
    # bc_ref: (1, 64)        conv bias (f32)
    # w1_ref: (Lp, 64, 128)  FC1 weight reordered so w1[t, c, :] == W1[:, c*Lp+t]
    # b1_ref: (1, 128)       FC1 bias (f32)
    # w2_ref: (128, NCp)     FC2 weight (zero-padded output cols)
    # b2_ref: (1, NCp)       FC2 bias (f32, zero-padded)
    # o_ref : (TB, NCp)      logits (f32)
    lp = w1_ref.shape[0]
    tb = o_ref.shape[0]
    h1 = b1_ref.shape[1]

    wc = wc_ref[...]
    bc = bc_ref[...]

    # Fused Conv1d + bias + ReLU + MaxPool1d(2) + flatten + FC1 accumulation.
    # relu(maxpool(he, ho)) == max(max(he_raw, ho_raw) + bias, 0) because both
    # relu and the shared bias add are monotone / common to the pooled pair.
    z1 = jnp.zeros((tb, h1), jnp.float32)
    for t in range(lp):  # unrolled; Lp is small (e.g. 7)
        he = jnp.dot(pk_ref[2 * t], wc, preferred_element_type=jnp.float32)
        ho = jnp.dot(pk_ref[2 * t + 1], wc, preferred_element_type=jnp.float32)
        pooled = jnp.maximum(jnp.maximum(he, ho) + bc, 0.0)        # (TB, 64)
        z1 = z1 + jnp.dot(pooled.astype(w1_ref.dtype), w1_ref[t],
                          preferred_element_type=jnp.float32)      # (TB, 128)

    a1 = jnp.maximum(z1 + b1_ref[...], 0.0)                        # ReLU(fc1)

    z2 = jnp.dot(a1.astype(w2_ref.dtype), w2_ref[...],
                 preferred_element_type=jnp.float32) + b2_ref[...]
    o_ref[...] = z2.astype(o_ref.dtype)                            # (TB, NCp)


def conv1d_forward(x, conv_w, conv_b, w1, b1, w2, b2, *,
                   compute_dtype=jnp.bfloat16, tb_cap=256):
    """x: (B, C, L) float32. Weights in PyTorch layout:
    conv_w (64, Cin, 3), conv_b (64,), w1 (128, 64*Lp), b1 (128,),
    w2 (NC, 128), b2 (NC,). Returns (B, NC) float32 logits."""
    B, C, L = x.shape
    Cout, Cin, K = conv_w.shape
    Lout = L - K + 1
    Lp = Lout // 2
    CK = Cin * K
    H1 = w1.shape[0]
    NC = w2.shape[0]

    LANE = 128
    CKp = _round_up(CK, LANE)     # lane-dense contraction dim
    NCp = _round_up(NC, LANE)     # lane-dense output store

    # --- module prologue: slice to Cin channels, zero-pad back (no-op if C==Cin)
    x = x[:, :Cin, :]
    if x.shape[1] < Cin:
        x = jnp.concatenate(
            [x, jnp.zeros((B, Cin - x.shape[1], L), x.dtype)], axis=1)

    # --- batch tiling (TB multiple of 8; many grid steps when B is large) ---
    TB = min(tb_cap, _round_up(B, 8))
    Bp = _round_up(B, TB)
    if Bp > B:
        x = jnp.concatenate([x, jnp.zeros((Bp - B, Cin, L), x.dtype)], axis=0)
    nb = Bp // TB

    # --- glue: im2col + lane padding (pure XLA reshuffles, done once) ---
    # patches[l, b, c*K + k] = x[b, c, l + k]
    patches = jnp.stack([x[:, :, k:k + Lout] for k in range(K)], axis=-1)
    patches = patches.transpose(2, 0, 1, 3).reshape(Lout, Bp, CK)
    patches = jnp.pad(patches, ((0, 0), (0, 0), (0, CKp - CK)))
    pk = patches[:2 * Lp].astype(compute_dtype)          # (2*Lp, Bp, CKp)

    # --- glue: weight re-layouts (done once) ---
    wc = jnp.pad(conv_w.reshape(Cout, CK).T,
                 ((0, CKp - CK), (0, 0))).astype(compute_dtype)     # (CKp, 64)
    bc = conv_b.reshape(1, Cout).astype(jnp.float32)
    # PyTorch flatten index is c*Lp + t; reorder so the kernel consumes t-major.
    w1_k = jnp.transpose(w1.reshape(H1, Cout, Lp),
                         (2, 1, 0)).astype(compute_dtype)           # (Lp, 64, 128)
    b1_k = b1.reshape(1, H1).astype(jnp.float32)
    w2_k = jnp.pad(w2.T, ((0, 0), (0, NCp - NC))).astype(compute_dtype)  # (128,NCp)
    b2_k = jnp.pad(b2, (0, NCp - NC)).reshape(1, NCp).astype(jnp.float32)

    itm = jnp.dtype(compute_dtype).itemsize
    flops = 2 * Bp * (2 * Lp * CKp * Cout + Lp * Cout * H1 + H1 * NCp)
    bytes_accessed = ((pk.size + wc.size + w1_k.size + w2_k.size) * itm
                      + (bc.size + b1_k.size + b2_k.size) * 4 + Bp * NCp * 4)

    out = pl.pallas_call(
        _conv1d_kernel,
        out_shape=jax.ShapeDtypeStruct((Bp, NCp), jnp.float32),
        grid=(nb,),
        in_specs=[
            pl.BlockSpec((2 * Lp, TB, CKp), lambda b: (0, b, 0)),
            pl.BlockSpec((CKp, Cout), lambda b: (0, 0)),
            pl.BlockSpec((1, Cout), lambda b: (0, 0)),
            pl.BlockSpec((Lp, Cout, H1), lambda b: (0, 0, 0)),
            pl.BlockSpec((1, H1), lambda b: (0, 0)),
            pl.BlockSpec((H1, NCp), lambda b: (0, 0)),
            pl.BlockSpec((1, NCp), lambda b: (0, 0)),
        ],
        out_specs=pl.BlockSpec((TB, NCp), lambda b: (b, 0)),
        compiler_params=pltpu.CompilerParams(
            dimension_semantics=("parallel",)),
        cost_estimate=pl.CostEstimate(flops=flops, transcendentals=0,
                                      bytes_accessed=bytes_accessed),
    )(pk, wc, bc, w1_k, b1_k, w2_k, b2_k)

    return out[:B, :NC]


def ref_forward(x, conv_w, conv_b, w1, b1, w2, b2):
    """Pure-JAX reference mirroring the PyTorch Conv1dModel.forward exactly."""
    B, C, L = x.shape
    Cout = conv_w.shape[0]
    Lout = L - 2
    Lp = Lout // 2
    patches = jnp.stack([x[:, :, k:k + Lout] for k in range(3)], axis=-1)
    h = jnp.einsum('bclk,ock->bol', patches, conv_w) + conv_b[None, :, None]
    h = jnp.maximum(h, 0.0)                                    # (B, 64, Lout)
    h = h[:, :, :2 * Lp].reshape(B, Cout, Lp, 2).max(axis=-1)  # MaxPool1d(2)
    flat = h.reshape(B, Cout * Lp)                             # PyTorch .view order
    a1 = jnp.maximum(flat @ w1.T + b1, 0.0)                    # ReLU(fc1)
    return a1 @ w2.T + b2                                      # raw logits


if __name__ == "__main__":
    # Small, module-consistent shapes.
    B, input_size, feature_size, num_classes = 2, 4, 16, 10
    Lp = (feature_size - 2) // 2
    flat_dim = 64 * Lp

    key = jax.random.PRNGKey(0)
    kx, kc, k1, k2 = jax.random.split(key, 4)

    x = jax.random.normal(kx, (B, input_size, feature_size), jnp.float32)

    # Deterministic kaiming-normal weights (std = sqrt(2 / fan_in)), zero biases,
    # matching BaseModel.init_weights semantics (synthetic init, not a checkpoint).
    conv_w = jax.random.normal(kc, (64, input_size, 3), jnp.float32) * jnp.sqrt(
        2.0 / (input_size * 3))
    conv_b = jnp.zeros((64,), jnp.float32)
    w1 = jax.random.normal(k1, (128, flat_dim), jnp.float32) * jnp.sqrt(2.0 / flat_dim)
    b1 = jnp.zeros((128,), jnp.float32)
    w2 = jax.random.normal(k2, (num_classes, 128), jnp.float32) * jnp.sqrt(2.0 / 128)
    b2 = jnp.zeros((num_classes,), jnp.float32)

    ref = ref_forward(x, conv_w, conv_b, w1, b1, w2, b2)

    # f32 path: tight numerical check against the pure-JAX reference.
    out_f32 = jax.block_until_ready(
        conv1d_forward(x, conv_w, conv_b, w1, b1, w2, b2,
                       compute_dtype=jnp.float32))
    assert out_f32.shape == (B, num_classes)
    assert jnp.allclose(out_f32, ref, atol=1e-4, rtol=1e-4)

    # bf16 path (default perf config for v6e/v7x): loose check.
    out_bf16 = jax.block_until_ready(
        conv1d_forward(x, conv_w, conv_b, w1, b1, w2, b2))
    assert out_bf16.shape == (B, num_classes)
    assert jnp.allclose(out_bf16, ref, atol=2e-1, rtol=5e-2)

    print("KERNEL_OK")
</pallas_src>

<mosaic_0001>
module attributes {stable_mosaic.version = 11 : i64} {
  func.func @_conv1d_kernel(%arg0: i32, %arg1: memref<14x8x128xf32, #tpu.memory_space<vmem>>, %arg2: memref<128x64xf32, #tpu.memory_space<vmem>>, %arg3: memref<1x64xf32, #tpu.memory_space<vmem>>, %arg4: memref<7x64x128xf32, #tpu.memory_space<vmem>>, %arg5: memref<1x128xf32, #tpu.memory_space<vmem>>, %arg6: memref<128x128xf32, #tpu.memory_space<vmem>>, %arg7: memref<1x128xf32, #tpu.memory_space<vmem>>, %arg8: memref<8x128xf32, #tpu.memory_space<vmem>>) attributes {dimension_semantics = [#tpu.dimension_semantics<parallel>], iteration_bounds = array<i64: 1>, scalar_prefetch = 0 : i64, scratch_operands = 0 : i64, tpu.core_type = #tpu.core_type<tc>, window_params = [{transform_indices = @transform_0, window_bounds = array<i64: 14, 8, 128>}, {pipeline_mode = #tpu.pipeline_mode<synchronous>, transform_indices = @transform_1, window_bounds = array<i64: 128, 64>}, {pipeline_mode = #tpu.pipeline_mode<synchronous>, transform_indices = @transform_2, window_bounds = array<i64: 1, 64>}, {pipeline_mode = #tpu.pipeline_mode<synchronous>, transform_indices = @transform_3, window_bounds = array<i64: 7, 64, 128>}, {pipeline_mode = #tpu.pipeline_mode<synchronous>, transform_indices = @transform_4, window_bounds = array<i64: 1, 128>}, {pipeline_mode = #tpu.pipeline_mode<synchronous>, transform_indices = @transform_5, window_bounds = array<i64: 128, 128>}, {pipeline_mode = #tpu.pipeline_mode<synchronous>, transform_indices = @transform_6, window_bounds = array<i64: 1, 128>}, {transform_indices = @transform_7, window_bounds = array<i64: 8, 128>}]} {
    %c0 = arith.constant 0 : index
    %c0_0 = arith.constant 0 : index
    %0 = vector.load %arg2[%c0, %c0_0] : memref<128x64xf32, #tpu.memory_space<vmem>>, vector<128x64xf32>
    %c0_1 = arith.constant 0 : index
    %c0_2 = arith.constant 0 : index
    %1 = vector.load %arg3[%c0_1, %c0_2] : memref<1x64xf32, #tpu.memory_space<vmem>>, vector<1x64xf32>
    %cst = arith.constant 0.000000e+00 : f32
    %2 = vector.broadcast %cst : f32 to vector<8x128xf32>
    %c0_3 = arith.constant 0 : index
    %c0_4 = arith.constant 0 : index
    %c0_5 = arith.constant 0 : index
    %3 = vector.load %arg1[%c0_3, %c0_4, %c0_5] : memref<14x8x128xf32, #tpu.memory_space<vmem>>, vector<1x8x128xf32>
    %4 = vector.shape_cast %3 : vector<1x8x128xf32> to vector<8x128xf32>
    %cst_6 = arith.constant dense<0.000000e+00> : vector<8x64xf32>
    %5 = tpu.matmul %4, %0, %cst_6 {dimension_numbers = #tpu.dot_dimension_numbers<[1], [0], [0], [1], [0, 0, 1, 1], [], []>} : vector<8x128xf32>, vector<128x64xf32>, vector<8x64xf32> -> vector<8x64xf32>
    %c1 = arith.constant 1 : index
    %c0_7 = arith.constant 0 : index
    %c0_8 = arith.constant 0 : index
    %6 = vector.load %arg1[%c1, %c0_7, %c0_8] : memref<14x8x128xf32, #tpu.memory_space<vmem>>, vector<1x8x128xf32>
    %7 = vector.shape_cast %6 : vector<1x8x128xf32> to vector<8x128xf32>
    %cst_9 = arith.constant dense<0.000000e+00> : vector<8x64xf32>
    %8 = tpu.matmul %7, %0, %cst_9 {dimension_numbers = #tpu.dot_dimension_numbers<[1], [0], [0], [1], [0, 0, 1, 1], [], []>} : vector<8x128xf32>, vector<128x64xf32>, vector<8x64xf32> -> vector<8x64xf32>
    %9 = arith.maximumf %5, %8 : vector<8x64xf32>
    %10 = vector.broadcast %1 : vector<1x64xf32> to vector<8x64xf32>
    %11 = arith.addf %9, %10 : vector<8x64xf32>
    %cst_10 = arith.constant 0.000000e+00 : f32
    %12 = vector.broadcast %cst_10 : f32 to vector<8x64xf32>
    %13 = arith.maximumf %11, %12 : vector<8x64xf32>
    %c0_11 = arith.constant 0 : index
    %c0_12 = arith.constant 0 : index
    %c0_13 = arith.constant 0 : index
    %14 = vector.load %arg4[%c0_11, %c0_12, %c0_13] : memref<7x64x128xf32, #tpu.memory_space<vmem>>, vector<1x64x128xf32>
    %15 = vector.shape_cast %14 : vector<1x64x128xf32> to vector<64x128xf32>
    %cst_14 = arith.constant dense<0.000000e+00> : vector<8x128xf32>
    %16 = tpu.matmul %13, %15, %cst_14 {dimension_numbers = #tpu.dot_dimension_numbers<[1], [0], [0], [1], [0, 0, 1, 1], [], []>} : vector<8x64xf32>, vector<64x128xf32>, vector<8x128xf32> -> vector<8x128xf32>
    %17 = arith.addf %2, %16 : vector<8x128xf32>
    %c2 = arith.constant 2 : index
    %c0_15 = arith.constant 0 : index
    %c0_16 = arith.constant 0 : index
    %18 = vector.load %arg1[%c2, %c0_15, %c0_16] : memref<14x8x128xf32, #tpu.memory_space<vmem>>, vector<1x8x128xf32>
    %19 = vector.shape_cast %18 : vector<1x8x128xf32> to vector<8x128xf32>
    %cst_17 = arith.constant dense<0.000000e+00> : vector<8x64xf32>
    %20 = tpu.matmul %19, %0, %cst_17 {dimension_numbers = #tpu.dot_dimension_numbers<[1], [0], [0], [1], [0, 0, 1, 1], [], []>} : vector<8x128xf32>, vector<128x64xf32>, vector<8x64xf32> -> vector<8x64xf32>
    %c3 = arith.constant 3 : index
    %c0_18 = arith.constant 0 : index
    %c0_19 = arith.constant 0 : index
    %21 = vector.load %arg1[%c3, %c0_18, %c0_19] : memref<14x8x128xf32, #tpu.memory_space<vmem>>, vector<1x8x128xf32>
    %22 = vector.shape_cast %21 : vector<1x8x128xf32> to vector<8x128xf32>
    %cst_20 = arith.constant dense<0.000000e+00> : vector<8x64xf32>
    %23 = tpu.matmul %22, %0, %cst_20 {dimension_numbers = #tpu.dot_dimension_numbers<[1], [0], [0], [1], [0, 0, 1, 1], [], []>} : vector<8x128xf32>, vector<128x64xf32>, vector<8x64xf32> -> vector<8x64xf32>
    %24 = arith.maximumf %20, %23 : vector<8x64xf32>
    %25 = vector.broadcast %1 : vector<1x64xf32> to vector<8x64xf32>
    %26 = arith.addf %24, %25 : vector<8x64xf32>
    %cst_21 = arith.constant 0.000000e+00 : f32
    %27 = vector.broadcast %cst_21 : f32 to vector<8x64xf32>
    %28 = arith.maximumf %26, %27 : vector<8x64xf32>
    %c1_22 = arith.constant 1 : index
    %c0_23 = arith.constant 0 : index
    %c0_24 = arith.constant 0 : index
    %29 = vector.load %arg4[%c1_22, %c0_23, %c0_24] : memref<7x64x128xf32, #tpu.memory_space<vmem>>, vector<1x64x128xf32>
    %30 = vector.shape_cast %29 : vector<1x64x128xf32> to vector<64x128xf32>
    %cst_25 = arith.constant dense<0.000000e+00> : vector<8x128xf32>
    %31 = tpu.matmul %28, %30, %cst_25 {dimension_numbers = #tpu.dot_dimension_numbers<[1], [0], [0], [1], [0, 0, 1, 1], [], []>} : vector<8x64xf32>, vector<64x128xf32>, vector<8x128xf32> -> vector<8x128xf32>
    %32 = arith.addf %17, %31 : vector<8x128xf32>
    %c4 = arith.constant 4 : index
    %c0_26 = arith.constant 0 : index
    %c0_27 = arith.constant 0 : index
    %33 = vector.load %arg1[%c4, %c0_26, %c0_27] : memref<14x8x128xf32, #tpu.memory_space<vmem>>, vector<1x8x128xf32>
    %34 = vector.shape_cast %33 : vector<1x8x128xf32> to vector<8x128xf32>
    %cst_28 = arith.constant dense<0.000000e+00> : vector<8x64xf32>
    %35 = tpu.matmul %34, %0, %cst_28 {dimension_numbers = #tpu.dot_dimension_numbers<[1], [0], [0], [1], [0, 0, 1, 1], [], []>} : vector<8x128xf32>, vector<128x64xf32>, vector<8x64xf32> -> vector<8x64xf32>
    %c5 = arith.constant 5 : index
    %c0_29 = arith.constant 0 : index
    %c0_30 = arith.constant 0 : index
    %36 = vector.load %arg1[%c5, %c0_29, %c0_30] : memref<14x8x128xf32, #tpu.memory_space<vmem>>, vector<1x8x128xf32>
    %37 = vector.shape_cast %36 : vector<1x8x128xf32> to vector<8x128xf32>
    %cst_31 = arith.constant dense<0.000000e+00> : vector<8x64xf32>
    %38 = tpu.matmul %37, %0, %cst_31 {dimension_numbers = #tpu.dot_dimension_numbers<[1], [0], [0], [1], [0, 0, 1, 1], [], []>} : vector<8x128xf32>, vector<128x64xf32>, vector<8x64xf32> -> vector<8x64xf32>
    %39 = arith.maximumf %35, %38 : vector<8x64xf32>
    %40 = vector.broadcast %1 : vector<1x64xf32> to vector<8x64xf32>
    %41 = arith.addf %39, %40 : vector<8x64xf32>
    %cst_32 = arith.constant 0.000000e+00 : f32
    %42 = vector.broadcast %cst_32 : f32 to vector<8x64xf32>
    %43 = arith.maximumf %41, %42 : vector<8x64xf32>
    %c2_33 = arith.constant 2 : index
    %c0_34 = arith.constant 0 : index
    %c0_35 = arith.constant 0 : index
    %44 = vector.load %arg4[%c2_33, %c0_34, %c0_35] : memref<7x64x128xf32, #tpu.memory_space<vmem>>, vector<1x64x128xf32>
    %45 = vector.shape_cast %44 : vector<1x64x128xf32> to vector<64x128xf32>
    %cst_36 = arith.constant dense<0.000000e+00> : vector<8x128xf32>
    %46 = tpu.matmul %43, %45, %cst_36 {dimension_numbers = #tpu.dot_dimension_numbers<[1], [0], [0], [1], [0, 0, 1, 1], [], []>} : vector<8x64xf32>, vector<64x128xf32>, vector<8x128xf32> -> vector<8x128xf32>
    %47 = arith.addf %32, %46 : vector<8x128xf32>
    %c6 = arith.constant 6 : index
    %c0_37 = arith.constant 0 : index
    %c0_38 = arith.constant 0 : index
    %48 = vector.load %arg1[%c6, %c0_37, %c0_38] : memref<14x8x128xf32, #tpu.memory_space<vmem>>, vector<1x8x128xf32>
    %49 = vector.shape_cast %48 : vector<1x8x128xf32> to vector<8x128xf32>
    %cst_39 = arith.constant dense<0.000000e+00> : vector<8x64xf32>
    %50 = tpu.matmul %49, %0, %cst_39 {dimension_numbers = #tpu.dot_dimension_numbers<[1], [0], [0], [1], [0, 0, 1, 1], [], []>} : vector<8x128xf32>, vector<128x64xf32>, vector<8x64xf32> -> vector<8x64xf32>
    %c7 = arith.constant 7 : index
    %c0_40 = arith.constant 0 : index
    %c0_41 = arith.constant 0 : index
    %51 = vector.load %arg1[%c7, %c0_40, %c0_41] : memref<14x8x128xf32, #tpu.memory_space<vmem>>, vector<1x8x128xf32>
    %52 = vector.shape_cast %51 : vector<1x8x128xf32> to vector<8x128xf32>
    %cst_42 = arith.constant dense<0.000000e+00> : vector<8x64xf32>
    %53 = tpu.matmul %52, %0, %cst_42 {dimension_numbers = #tpu.dot_dimension_numbers<[1], [0], [0], [1], [0, 0, 1, 1], [], []>} : vector<8x128xf32>, vector<128x64xf32>, vector<8x64xf32> -> vector<8x64xf32>
    %54 = arith.maximumf %50, %53 : vector<8x64xf32>
    %55 = vector.broadcast %1 : vector<1x64xf32> to vector<8x64xf32>
    %56 = arith.addf %54, %55 : vector<8x64xf32>
    %cst_43 = arith.constant 0.000000e+00 : f32
    %57 = vector.broadcast %cst_43 : f32 to vector<8x64xf32>
    %58 = arith.maximumf %56, %57 : vector<8x64xf32>
    %c3_44 = arith.constant 3 : index
    %c0_45 = arith.constant 0 : index
    %c0_46 = arith.constant 0 : index
    %59 = vector.load %arg4[%c3_44, %c0_45, %c0_46] : memref<7x64x128xf32, #tpu.memory_space<vmem>>, vector<1x64x128xf32>
    %60 = vector.shape_cast %59 : vector<1x64x128xf32> to vector<64x128xf32>
    %cst_47 = arith.constant dense<0.000000e+00> : vector<8x128xf32>
    %61 = tpu.matmul %58, %60, %cst_47 {dimension_numbers = #tpu.dot_dimension_numbers<[1], [0], [0], [1], [0, 0, 1, 1], [], []>} : vector<8x64xf32>, vector<64x128xf32>, vector<8x128xf32> -> vector<8x128xf32>
    %62 = arith.addf %47, %61 : vector<8x128xf32>
    %c8 = arith.constant 8 : index
    %c0_48 = arith.constant 0 : index
    %c0_49 = arith.constant 0 : index
    %63 = vector.load %arg1[%c8, %c0_48, %c0_49] : memref<14x8x128xf32, #tpu.memory_space<vmem>>, vector<1x8x128xf32>
    %64 = vector.shape_cast %63 : vector<1x8x128xf32> to vector<8x128xf32>
    %cst_50 = arith.constant dense<0.000000e+00> : vector<8x64xf32>
    %65 = tpu.matmul %64, %0, %cst_50 {dimension_numbers = #tpu.dot_dimension_numbers<[1], [0], [0], [1], [0, 0, 1, 1], [], []>} : vector<8x128xf32>, vector<128x64xf32>, vector<8x64xf32> -> vector<8x64xf32>
    %c9 = arith.constant 9 : index
    %c0_51 = arith.constant 0 : index
    %c0_52 = arith.constant 0 : index
    %66 = vector.load %arg1[%c9, %c0_51, %c0_52] : memref<14x8x128xf32, #tpu.memory_space<vmem>>, vector<1x8x128xf32>
    %67 = vector.shape_cast %66 : vector<1x8x128xf32> to vector<8x128xf32>
    %cst_53 = arith.constant dense<0.000000e+00> : vector<8x64xf32>
    %68 = tpu.matmul %67, %0, %cst_53 {dimension_numbers = #tpu.dot_dimension_numbers<[1], [0], [0], [1], [0, 0, 1, 1], [], []>} : vector<8x128xf32>, vector<128x64xf32>, vector<8x64xf32> -> vector<8x64xf32>
    %69 = arith.maximumf %65, %68 : vector<8x64xf32>
    %70 = vector.broadcast %1 : vector<1x64xf32> to vector<8x64xf32>
    %71 = arith.addf %69, %70 : vector<8x64xf32>
    %cst_54 = arith.constant 0.000000e+00 : f32
    %72 = vector.broadcast %cst_54 : f32 to vector<8x64xf32>
    %73 = arith.maximumf %71, %72 : vector<8x64xf32>
    %c4_55 = arith.constant 4 : index
    %c0_56 = arith.constant 0 : index
    %c0_57 = arith.constant 0 : index
    %74 = vector.load %arg4[%c4_55, %c0_56, %c0_57] : memref<7x64x128xf32, #tpu.memory_space<vmem>>, vector<1x64x128xf32>
    %75 = vector.shape_cast %74 : vector<1x64x128xf32> to vector<64x128xf32>
    %cst_58 = arith.constant dense<0.000000e+00> : vector<8x128xf32>
    %76 = tpu.matmul %73, %75, %cst_58 {dimension_numbers = #tpu.dot_dimension_numbers<[1], [0], [0], [1], [0, 0, 1, 1], [], []>} : vector<8x64xf32>, vector<64x128xf32>, vector<8x128xf32> -> vector<8x128xf32>
    %77 = arith.addf %62, %76 : vector<8x128xf32>
    %c10 = arith.constant 10 : index
    %c0_59 = arith.constant 0 : index
    %c0_60 = arith.constant 0 : index
    %78 = vector.load %arg1[%c10, %c0_59, %c0_60] : memref<14x8x128xf32, #tpu.memory_space<vmem>>, vector<1x8x128xf32>
    %79 = vector.shape_cast %78 : vector<1x8x128xf32> to vector<8x128xf32>
    %cst_61 = arith.constant dense<0.000000e+00> : vector<8x64xf32>
    %80 = tpu.matmul %79, %0, %cst_61 {dimension_numbers = #tpu.dot_dimension_numbers<[1], [0], [0], [1], [0, 0, 1, 1], [], []>} : vector<8x128xf32>, vector<128x64xf32>, vector<8x64xf32> -> vector<8x64xf32>
    %c11 = arith.constant 11 : index
    %c0_62 = arith.constant 0 : index
    %c0_63 = arith.constant 0 : index
    %81 = vector.load %arg1[%c11, %c0_62, %c0_63] : memref<14x8x128xf32, #tpu.memory_space<vmem>>, vector<1x8x128xf32>
    %82 = vector.shape_cast %81 : vector<1x8x128xf32> to vector<8x128xf32>
    %cst_64 = arith.constant dense<0.000000e+00> : vector<8x64xf32>
    %83 = tpu.matmul %82, %0, %cst_64 {dimension_numbers = #tpu.dot_dimension_numbers<[1], [0], [0], [1], [0, 0, 1, 1], [], []>} : vector<8x128xf32>, vector<128x64xf32>, vector<8x64xf32> -> vector<8x64xf32>
    %84 = arith.maximumf %80, %83 : vector<8x64xf32>
    %85 = vector.broadcast %1 : vector<1x64xf32> to vector<8x64xf32>
    %86 = arith.addf %84, %85 : vector<8x64xf32>
    %cst_65 = arith.constant 0.000000e+00 : f32
    %87 = vector.broadcast %cst_65 : f32 to vector<8x64xf32>
    %88 = arith.maximumf %86, %87 : vector<8x64xf32>
    %c5_66 = arith.constant 5 : index
    %c0_67 = arith.constant 0 : index
    %c0_68 = arith.constant 0 : index
    %89 = vector.load %arg4[%c5_66, %c0_67, %c0_68] : memref<7x64x128xf32, #tpu.memory_space<vmem>>, vector<1x64x128xf32>
    %90 = vector.shape_cast %89 : vector<1x64x128xf32> to vector<64x128xf32>
    %cst_69 = arith.constant dense<0.000000e+00> : vector<8x128xf32>
    %91 = tpu.matmul %88, %90, %cst_69 {dimension_numbers = #tpu.dot_dimension_numbers<[1], [0], [0], [1], [0, 0, 1, 1], [], []>} : vector<8x64xf32>, vector<64x128xf32>, vector<8x128xf32> -> vector<8x128xf32>
    %92 = arith.addf %77, %91 : vector<8x128xf32>
    %c12 = arith.constant 12 : index
    %c0_70 = arith.constant 0 : index
    %c0_71 = arith.constant 0 : index
    %93 = vector.load %arg1[%c12, %c0_70, %c0_71] : memref<14x8x128xf32, #tpu.memory_space<vmem>>, vector<1x8x128xf32>
    %94 = vector.shape_cast %93 : vector<1x8x128xf32> to vector<8x128xf32>
    %cst_72 = arith.constant dense<0.000000e+00> : vector<8x64xf32>
    %95 = tpu.matmul %94, %0, %cst_72 {dimension_numbers = #tpu.dot_dimension_numbers<[1], [0], [0], [1], [0, 0, 1, 1], [], []>} : vector<8x128xf32>, vector<128x64xf32>, vector<8x64xf32> -> vector<8x64xf32>
    %c13 = arith.constant 13 : index
    %c0_73 = arith.constant 0 : index
    %c0_74 = arith.constant 0 : index
    %96 = vector.load %arg1[%c13, %c0_73, %c0_74] : memref<14x8x128xf32, #tpu.memory_space<vmem>>, vector<1x8x128xf32>
    %97 = vector.shape_cast %96 : vector<1x8x128xf32> to vector<8x128xf32>
    %cst_75 = arith.constant dense<0.000000e+00> : vector<8x64xf32>
    %98 = tpu.matmul %97, %0, %cst_75 {dimension_numbers = #tpu.dot_dimension_numbers<[1], [0], [0], [1], [0, 0, 1, 1], [], []>} : vector<8x128xf32>, vector<128x64xf32>, vector<8x64xf32> -> vector<8x64xf32>
    %99 = arith.maximumf %95, %98 : vector<8x64xf32>
    %100 = vector.broadcast %1 : vector<1x64xf32> to vector<8x64xf32>
    %101 = arith.addf %99, %100 : vector<8x64xf32>
    %cst_76 = arith.constant 0.000000e+00 : f32
    %102 = vector.broadcast %cst_76 : f32 to vector<8x64xf32>
    %103 = arith.maximumf %101, %102 : vector<8x64xf32>
    %c6_77 = arith.constant 6 : index
    %c0_78 = arith.constant 0 : index
    %c0_79 = arith.constant 0 : index
    %104 = vector.load %arg4[%c6_77, %c0_78, %c0_79] : memref<7x64x128xf32, #tpu.memory_space<vmem>>, vector<1x64x128xf32>
    %105 = vector.shape_cast %104 : vector<1x64x128xf32> to vector<64x128xf32>
    %cst_80 = arith.constant dense<0.000000e+00> : vector<8x128xf32>
    %106 = tpu.matmul %103, %105, %cst_80 {dimension_numbers = #tpu.dot_dimension_numbers<[1], [0], [0], [1], [0, 0, 1, 1], [], []>} : vector<8x64xf32>, vector<64x128xf32>, vector<8x128xf32> -> vector<8x128xf32>
    %107 = arith.addf %92, %106 : vector<8x128xf32>
    %c0_81 = arith.constant 0 : index
    %c0_82 = arith.constant 0 : index
    %108 = vector.load %arg5[%c0_81, %c0_82] : memref<1x128xf32, #tpu.memory_space<vmem>>, vector<1x128xf32>
    %109 = vector.broadcast %108 : vector<1x128xf32> to vector<8x128xf32>
    %110 = arith.addf %107, %109 : vector<8x128xf32>
    %cst_83 = arith.constant 0.000000e+00 : f32
    %111 = vector.broadcast %cst_83 : f32 to vector<8x128xf32>
    %112 = arith.maximumf %110, %111 : vector<8x128xf32>
    %c0_84 = arith.constant 0 : index
    %c0_85 = arith.constant 0 : index
    %113 = vector.load %arg6[%c0_84, %c0_85] : memref<128x128xf32, #tpu.memory_space<vmem>>, vector<128x128xf32>
    %cst_86 = arith.constant dense<0.000000e+00> : vector<8x128xf32>
    %114 = tpu.matmul %112, %113, %cst_86 {dimension_numbers = #tpu.dot_dimension_numbers<[1], [0], [0], [1], [0, 0, 1, 1], [], []>} : vector<8x128xf32>, vector<128x128xf32>, vector<8x128xf32> -> vector<8x128xf32>
    %c0_87 = arith.constant 0 : index
    %c0_88 = arith.constant 0 : index
    %115 = vector.load %arg7[%c0_87, %c0_88] : memref<1x128xf32, #tpu.memory_space<vmem>>, vector<1x128xf32>
    %116 = vector.broadcast %115 : vector<1x128xf32> to vector<8x128xf32>
    %117 = arith.addf %114, %116 : vector<8x128xf32>
    %c0_89 = arith.constant 0 : index
    %c0_90 = arith.constant 0 : index
    %118 = vector.load %arg8[%c0_89, %c0_90] : memref<8x128xf32, #tpu.memory_space<vmem>>, vector<8x128xf32>
    tpu.vector_store %arg8[%c0_89, %c0_90], %117 {strides = array<i32>} : memref<8x128xf32, #tpu.memory_space<vmem>>, vector<8x128xf32>,
    return
  }
  func.func @transform_0(%arg0: i32) -> (i32, i32, i32) {
    %c0_i32 = arith.constant 0 : i32
    %c0_i32_0 = arith.constant 0 : i32
    %c0_i32_1 = arith.constant 0 : i32
    return %c0_i32, %arg0, %c0_i32_0 : i32, i32, i32
  }
  func.func @transform_1(%arg0: i32) -> (i32, i32) {
    %c0_i32 = arith.constant 0 : i32
    %c0_i32_0 = arith.constant 0 : i32
    %c0_i32_1 = arith.constant 0 : i32
    return %c0_i32, %c0_i32_0 : i32, i32
  }
  func.func @transform_2(%arg0: i32) -> (i32, i32) {
    %c0_i32 = arith.constant 0 : i32
    %c0_i32_0 = arith.constant 0 : i32
    %c0_i32_1 = arith.constant 0 : i32
    return %c0_i32, %c0_i32_0 : i32, i32
  }
  func.func @transform_3(%arg0: i32) -> (i32, i32, i32) {
    %c0_i32 = arith.constant 0 : i32
    %c0_i32_0 = arith.constant 0 : i32
    %c0_i32_1 = arith.constant 0 : i32
    %c0_i32_2 = arith.constant 0 : i32
    return %c0_i32, %c0_i32_0, %c0_i32_1 : i32, i32, i32
  }
  func.func @transform_4(%arg0: i32) -> (i32, i32) {
    %c0_i32 = arith.constant 0 : i32
    %c0_i32_0 = arith.constant 0 : i32
    %c0_i32_1 = arith.constant 0 : i32
    return %c0_i32, %c0_i32_0 : i32, i32
  }
  func.func @transform_5(%arg0: i32) -> (i32, i32) {
    %c0_i32 = arith.constant 0 : i32
    %c0_i32_0 = arith.constant 0 : i32
    %c0_i32_1 = arith.constant 0 : i32
    return %c0_i32, %c0_i32_0 : i32, i32
  }
  func.func @transform_6(%arg0: i32) -> (i32, i32) {
    %c0_i32 = arith.constant 0 : i32
    %c0_i32_0 = arith.constant 0 : i32
    %c0_i32_1 = arith.constant 0 : i32
    return %c0_i32, %c0_i32_0 : i32, i32
  }
  func.func @transform_7(%arg0: i32) -> (i32, i32) {
    %c0_i32 = arith.constant 0 : i32
    %c0_i32_0 = arith.constant 0 : i32
    return %arg0, %c0_i32 : i32, i32
  }
}

</mosaic_0001>

<llo_original>
// kernel: tpu_custom_call.1
$region0: #{tpu_custom_call.1}
  #allocation0 [shape = 'u32[]', space=smem, size = 0x4, offset = 0x4, fixed_abs, tag = 'smem constant byte address 0x4 - core index']
  #allocation1 [shape = 'u32[144,128]{1,0:T(1,128)}', space=vmem, size = 0x12000, scoped, tag = 'internal scratch']
  %s0 = inlined_call_operand.hbm [shape: f32[14,8,128], index: 0, kind: input, shape index: {}]
  %s1 = inlined_call_operand.vmem [shape: f32[128,64], index: 1, kind: input, shape index: {}]
  %s2 = inlined_call_operand.vmem [shape: f32[1,64], index: 2, kind: input, shape index: {}]
  %s3 = inlined_call_operand.hbm [shape: f32[7,64,128], index: 3, kind: input, shape index: {}]
  %s4 = inlined_call_operand.vmem [shape: f32[1,128], index: 4, kind: input, shape index: {}]
  %s5 = inlined_call_operand.vmem [shape: f32[128,128], index: 5, kind: input, shape index: {}]
  %s6 = inlined_call_operand.vmem [shape: f32[1,128], index: 6, kind: input, shape index: {}]
  %s7 = inlined_call_operand.hbm [shape: f32[8,128], index: 7, kind: output, shape index: {}]
  %s8 = sld [smem:[#allocation0]]
  $region46: #{tpu_custom_call.1} parent=0
    _
  %s10 = ssub.s32 1, %s8
  %s11 = scalar_select 0, %s10, %s8
  $region1: #{tpu_custom_call.1} parent=0
    #allocation2 [shape = 'u8[57344]{0}', space=vmem, size = 0xe000, scoped, tag = 'input window, operand 0, single buffered']
    #allocation3 [shape = 's32[1]{0}', space=sflag, size = 0x4, scoped, tag = 'scoped memory for tpu_custom_call.1']
    #allocation4 [shape = 's32[1]{0}', space=sflag, size = 0x4, scoped, tag = 'scoped memory for tpu_custom_call.1']
    #allocation5 [shape = 'u8[229376]{0}', space=vmem, size = 0x38000, scoped, tag = 'input window, operand 3, single buffered']
    #allocation6 [shape = 's32[1]{0}', space=sflag, size = 0x4, scoped, tag = 'scoped memory for tpu_custom_call.1']
    #allocation7 [shape = 'u8[4096]{0}', space=vmem, size = 0x1000, scoped, tag = 'output window, operand 0, single buffered']
    %12 = vsyncpa [#allocation3], 0
    %13 = vsyncpa [#allocation6], 0
    %14 = vsyncpa [#allocation4], 0
    // Predicated region
    $region2: #{tpu_custom_call.1} parent=1 // pred_check
      _
    $region3: #{tpu_custom_call.1} parent=1 // pred_check_branch
      %16 = sbr.rel (0) target = $region5
    $region4: #{tpu_custom_call.1} parent=1 // pred_region
      %s18 = ssub.s32 1792, 1792
      %19 = vsyncadd [#allocation3], %s18
      %s20 = sshll.u32 [#allocation2], 4
      %s21 = int_to_ptr.vmem [resolvable:$true] %s20
      %26 = dma.hbm_to_vmem [thread:$0]  %s0, 1792, %s21, [#allocation3], 128, 128, 8
    $region5: #{tpu_custom_call.1} parent=1 // pred_fallthru
      _
    // Predicated region
    $region6: #{tpu_custom_call.1} parent=1 // pred_check
      _
    $region7: #{tpu_custom_call.1} parent=1 // pred_check_branch
      %28 = sbr.rel (0) target = $region9
    $region8: #{tpu_custom_call.1} parent=1 // pred_region
      _
    $region9: #{tpu_custom_call.1} parent=1 // pred_fallthru
      _
    // Predicated region
    $region10: #{tpu_custom_call.1} parent=1 // pred_check
      _
    $region11: #{tpu_custom_call.1} parent=1 // pred_check_branch
      %30 = sbr.rel (0) target = $region13
    $region12: #{tpu_custom_call.1} parent=1 // pred_region
      _
    $region13: #{tpu_custom_call.1} parent=1 // pred_fallthru
      _
    // Predicated region
    $region14: #{tpu_custom_call.1} parent=1 // pred_check
      _
    $region15: #{tpu_custom_call.1} parent=1 // pred_check_branch
      %32 = sbr.rel (0) target = $region17
    $region16: #{tpu_custom_call.1} parent=1 // pred_region
      %s34 = ssub.s32 7168, 7168
      %35 = vsyncadd [#allocation6], %s34
      %s36 = sshll.u32 [#allocation5], 4
      %s37 = int_to_ptr.vmem [resolvable:$true] %s36
      %42 = dma.hbm_to_vmem [thread:$0]  %s3, 7168, %s37, [#allocation6], 128, 128, 8
    $region17: #{tpu_custom_call.1} parent=1 // pred_fallthru
      _
    // Predicated region
    $region18: #{tpu_custom_call.1} parent=1 // pred_check
      _
    $region19: #{tpu_custom_call.1} parent=1 // pred_check_branch
      %44 = sbr.rel (0) target = $region21
    $region20: #{tpu_custom_call.1} parent=1 // pred_region
      _
    $region21: #{tpu_custom_call.1} parent=1 // pred_fallthru
      _
    // Predicated region
    $region22: #{tpu_custom_call.1} parent=1 // pred_check
      _
    $region23: #{tpu_custom_call.1} parent=1 // pred_check_branch
      %46 = sbr.rel (0) target = $region25
    $region24: #{tpu_custom_call.1} parent=1 // pred_region
      _
    $region25: #{tpu_custom_call.1} parent=1 // pred_fallthru
      _
    // Predicated region
    $region26: #{tpu_custom_call.1} parent=1 // pred_check
      _
    $region27: #{tpu_custom_call.1} parent=1 // pred_check_branch
      %48 = sbr.rel (0) target = $region29
    $region28: #{tpu_custom_call.1} parent=1 // pred_region
      _
    $region29: #{tpu_custom_call.1} parent=1 // pred_fallthru
      _
    // Predicated region
    $region30: #{tpu_custom_call.1} parent=1 // pred_check
      _
    $region31: #{tpu_custom_call.1} parent=1 // pred_check_branch
      %50 = sbr.rel (0) target = $region33
    $region32: #{tpu_custom_call.1} parent=1 // pred_region
      %51 = dma.done [#allocation3], 1792
    $region33: #{tpu_custom_call.1} parent=1 // pred_fallthru
      _
    // Predicated region
    $region34: #{tpu_custom_call.1} parent=1 // pred_check
      _
    $region35: #{tpu_custom_call.1} parent=1 // pred_check_branch
      %53 = sbr.rel (0) target = $region37
    $region36: #{tpu_custom_call.1} parent=1 // pred_region
      %54 = dma.done [#allocation6], 7168
    $region37: #{tpu_custom_call.1} parent=1 // pred_fallthru
      _
    %v55 = vld [vmem:[%s1] sm:$0xff]
    %v56 = vld [vmem:[%s1 + $0x8] sm:$0xff]
    %v57 = vld [vmem:[%s1 + $0x10] sm:$0xff]
    %v58 = vld [vmem:[%s1 + $0x18] sm:$0xff]
    %v59 = vld [vmem:[%s1 + $0x20] sm:$0xff]
    %v60 = vld [vmem:[%s1 + $0x28] sm:$0xff]
    %v61 = vld [vmem:[%s1 + $0x30] sm:$0xff]
    %v62 = vld [vmem:[%s1 + $0x38] sm:$0xff]
    %v63 = vld [vmem:[%s1 + $0x40] sm:$0xff]
    %v64 = vld [vmem:[%s1 + $0x48] sm:$0xff]
    %v65 = vld [vmem:[%s1 + $0x50] sm:$0xff]
    %v66 = vld [vmem:[%s1 + $0x58] sm:$0xff]
    %v67 = vld [vmem:[%s1 + $0x60] sm:$0xff]
    %v68 = vld [vmem:[%s1 + $0x68] sm:$0xff]
    %v69 = vld [vmem:[%s1 + $0x70] sm:$0xff]
    %v70 = vld [vmem:[%s1 + $0x78] sm:$0xff]
    %v71 = vld [vmem:[%s2] sm:$0x1]
    %v72 = vld [vmem:[#allocation2] sm:$0xff]
    %73 = vmatprep.subr.mxu0 0.0
    %74 = vmatpush1.msra.mxu0 %v55
    %75 = vmatprep.subr.mxu0 0.0
    %76 = vmatpush1.msra.mxu0 %v56
    %77 = vmatprep.subr.mxu0 0.0
    %78 = vmatpush1.msra.mxu0 %v57
    %79 = vmatprep.subr.mxu0 0.0
    %80 = vmatpush1.msra.mxu0 %v58
    %81 = vmatprep.subr.mxu0 0.0
    %82 = vmatpush1.msra.mxu0 %v59
    %83 = vmatprep.subr.mxu0 0.0
    %84 = vmatpush1.msra.mxu0 %v60
    %85 = vmatprep.subr.mxu0 0.0
    %86 = vmatpush1.msra.mxu0 %v61
    %87 = vmatprep.subr.mxu0 0.0
    %88 = vmatpush1.msra.mxu0 %v62
    %89 = vmatprep.subr.mxu0 0.0
    %90 = vmatpush1.msra.mxu0 %v63
    %91 = vmatprep.subr.mxu0 0.0
    %92 = vmatpush1.msra.mxu0 %v64
    %93 = vmatprep.subr.mxu0 0.0
    %94 = vmatpush1.msra.mxu0 %v65
    %95 = vmatprep.subr.mxu0 0.0
    %96 = vmatpush1.msra.mxu0 %v66
    %97 = vmatprep.subr.mxu0 0.0
    %98 = vmatpush1.msra.mxu0 %v67
    %99 = vmatprep.subr.mxu0 0.0
    %100 = vmatpush1.msra.mxu0 %v68
    %101 = vmatprep.subr.mxu0 0.0
    %102 = vmatpush1.msra.mxu0 %v69
    %103 = vmatprep.subr.mxu0 0.0
    %104 = vmatpush1.msra.mxu0 %v70
    %105 = vmatprep.subr.mxu0 0.0
    %106 = vmatpush1.msra.mxu0 0.0
    %107 = vmatprep.subr.mxu0 0.0
    %108 = vmatpush1.msra.mxu0 0.0
    %109 = vmatprep.subr.mxu0 0.0
    %110 = vmatpush1.msra.mxu0 0.0
    %111 = vmatprep.subr.mxu0 0.0
    %112 = vmatpush1.msra.mxu0 0.0
    %113 = vmatprep.subr.mxu0 0.0
    %114 = vmatpush1.msra.mxu0 0.0
    %115 = vmatprep.subr.mxu0 0.0
    %116 = vmatpush1.msra.mxu0 0.0
    %117 = vmatprep.subr.mxu0 0.0
    %118 = vmatpush1.msra.mxu0 0.0
    %119 = vmatprep.subr.mxu0 0.0
    %120 = vmatpush1.msra.mxu0 0.0
    %121 = vmatprep.subr.mxu0 0.0
    %122 = vmatpush1.msra.mxu0 0.0
    %123 = vmatprep.subr.mxu0 0.0
    %124 = vmatpush1.msra.mxu0 0.0
    %125 = vmatprep.subr.mxu0 0.0
    %126 = vmatpush1.msra.mxu0 0.0
    %127 = vmatprep.subr.mxu0 0.0
    %128 = vmatpush1.msra.mxu0 0.0
    %129 = vmatprep.subr.mxu0 0.0
    %130 = vmatpush1.msra.mxu0 0.0
    %131 = vmatprep.subr.mxu0 0.0
    %132 = vmatpush1.msra.mxu0 0.0
    %133 = vmatprep.subr.mxu0 0.0
    %134 = vmatpush1.msra.mxu0 0.0
    %135 = vmatprep.subr.mxu0 0.0
    %136 = vmatpush1.msra.mxu0 0.0
    %137 = vmatprep.mubr.f32.mxu0 0.0
    %138 = vmatmul.mubr.f32.gmra.mrb[0].mxu0 %v72
    %v139 = vpop.f32.mrb[0].mxu0
    %v140 = vadd.f32 0.0, %v139
    %v141 = vpop.f32.mrb[0].mxu0
    %142 = vdwg.mxu0
    %s143 = scalar_lea.vmem [#allocation2], 8
    %v144 = vld [vmem:[%s143] sm:$0xff]
    %145 = vmatprep.subr.mxu0 0.0
    %146 = vmatpush1.msra.mxu0 %v55
    %147 = vmatprep.subr.mxu0 0.0
    %148 = vmatpush1.msra.mxu0 %v56
    %149 = vmatprep.subr.mxu0 0.0
    %150 = vmatpush1.msra.mxu0 %v57
    %151 = vmatprep.subr.mxu0 0.0
    %152 = vmatpush1.msra.mxu0 %v58
    %153 = vmatprep.subr.mxu0 0.0
    %154 = vmatpush1.msra.mxu0 %v59
    %155 = vmatprep.subr.mxu0 0.0
    %156 = vmatpush1.msra.mxu0 %v60
    %157 = vmatprep.subr.mxu0 0.0
    %158 = vmatpush1.msra.mxu0 %v61
    %159 = vmatprep.subr.mxu0 0.0
    %160 = vmatpush1.msra.mxu0 %v62
    %161 = vmatprep.subr.mxu0 0.0
    %162 = vmatpush1.msra.mxu0 %v63
    %163 = vmatprep.subr.mxu0 0.0
    %164 = vmatpush1.msra.mxu0 %v64
    %165 = vmatprep.subr.mxu0 0.0
    %166 = vmatpush1.msra.mxu0 %v65
    %167 = vmatprep.subr.mxu0 0.0
    %168 = vmatpush1.msra.mxu0 %v66
    %169 = vmatprep.subr.mxu0 0.0
    %170 = vmatpush1.msra.mxu0 %v67
    %171 = vmatprep.subr.mxu0 0.0
    %172 = vmatpush1.msra.mxu0 %v68
    %173 = vmatprep.subr.mxu0 0.0
    %174 = vmatpush1.msra.mxu0 %v69
    %175 = vmatprep.subr.mxu0 0.0
    %176 = vmatpush1.msra.mxu0 %v70
    %177 = vmatprep.subr.mxu0 0.0
    %178 = vmatpush1.msra.mxu0 0.0
    %179 = vmatprep.subr.mxu0 0.0
    %180 = vmatpush1.msra.mxu0 0.0
    %181 = vmatprep.subr.mxu0 0.0
    %182 = vmatpush1.msra.mxu0 0.0
    %183 = vmatprep.subr.mxu0 0.0
    %184 = vmatpush1.msra.mxu0 0.0
    %185 = vmatprep.subr.mxu0 0.0
    %186 = vmatpush1.msra.mxu0 0.0
    %187 = vmatprep.subr.mxu0 0.0
    %188 = vmatpush1.msra.mxu0 0.0
    %189 = vmatprep.subr.mxu0 0.0
    %190 = vmatpush1.msra.mxu0 0.0
    %191 = vmatprep.subr.mxu0 0.0
    %192 = vmatpush1.msra.mxu0 0.0
    %193 = vmatprep.subr.mxu0 0.0
    %194 = vmatpush1.msra.mxu0 0.0
    %195 = vmatprep.subr.mxu0 0.0
    %196 = vmatpush1.msra.mxu0 0.0
    %197 = vmatprep.subr.mxu0 0.0
    %198 = vmatpush1.msra.mxu0 0.0
    %199 = vmatprep.subr.mxu0 0.0
    %200 = vmatpush1.msra.mxu0 0.0
    %201 = vmatprep.subr.mxu0 0.0
    %202 = vmatpush1.msra.mxu0 0.0
    %203 = vmatprep.subr.mxu0 0.0
    %204 = vmatpush1.msra.mxu0 0.0
    %205 = vmatprep.subr.mxu0 0.0
    %206 = vmatpush1.msra.mxu0 0.0
    %207 = vmatprep.subr.mxu0 0.0
    %208 = vmatpush1.msra.mxu0 0.0
    %209 = vmatprep.mubr.f32.mxu0 0.0
    %210 = vmatmul.mubr.f32.gmra.mrb[0].mxu0 %v144
    %v211 = vpop.f32.mrb[0].mxu0
    %v212 = vadd.f32 0.0, %v211
    %v213 = vpop.f32.mrb[0].mxu0
    %214 = vdwg.mxu0
    %v215 = vmax.f32 %v140, %v212
    %v217 = vlaneseq
    %v218 = vshrl.u32 %v217, 7
    %v219 = vsub.s32 0, %v218
    %v220 = vrot.slane %v71, %v219
    %v222 = vadd.f32 %v215, %v220
    %v223 = vmax.f32 %v222, 0.0
    %v224 = vld [vmem:[#allocation5] sm:$0xff]
    %v225 = vld [vmem:[#allocation5 + $0x8] sm:$0xff]
    %v226 = vld [vmem:[#allocation5 + $0x10] sm:$0xff]
    %v227 = vld [vmem:[#allocation5 + $0x18] sm:$0xff]
    %v228 = vld [vmem:[#allocation5 + $0x20] sm:$0xff]
    %v229 = vld [vmem:[#allocation5 + $0x28] sm:$0xff]
    %v230 = vld [vmem:[#allocation5 + $0x30] sm:$0xff]
    %v231 = vld [vmem:[#allocation5 + $0x38] sm:$0xff]
    %s232 = scalar_lea.vmem [#allocation2], 16
    %v233 = vld [vmem:[%s232] sm:$0xff]
    %234 = vmatprep.subr.mxu0 0.0
    %235 = vmatpush1.msra.mxu0 %v55
    %236 = vmatprep.subr.mxu0 0.0
    %237 = vmatpush1.msra.mxu0 %v56
    %238 = vmatprep.subr.mxu0 0.0
    %239 = vmatpush1.msra.mxu0 %v57
    %240 = vmatprep.subr.mxu0 0.0
    %241 = vmatpush1.msra.mxu0 %v58
    %242 = vmatprep.subr.mxu0 0.0
    %243 = vmatpush1.msra.mxu0 %v59
    %244 = vmatprep.subr.mxu0 0.0
    %245 = vmatpush1.msra.mxu0 %v60
    %246 = vmatprep.subr.mxu0 0.0
    %247 = vmatpush1.msra.mxu0 %v61
    %248 = vmatprep.subr.mxu0 0.0
    %249 = vmatpush1.msra.mxu0 %v62
    %250 = vmatprep.subr.mxu0 0.0
    %251 = vmatpush1.msra.mxu0 %v63
    %252 = vmatprep.subr.mxu0 0.0
    %253 = vmatpush1.msra.mxu0 %v64
    %254 = vmatprep.subr.mxu0 0.0
    %255 = vmatpush1.msra.mxu0 %v65
    %256 = vmatprep.subr.mxu0 0.0
    %257 = vmatpush1.msra.mxu0 %v66
    %258 = vmatprep.subr.mxu0 0.0
    %259 = vmatpush1.msra.mxu0 %v67
    %260 = vmatprep.subr.mxu0 0.0
    %261 = vmatpush1.msra.mxu0 %v68
    %262 = vmatprep.subr.mxu0 0.0
    %263 = vmatpush1.msra.mxu0 %v69
    %264 = vmatprep.subr.mxu0 0.0
    %265 = vmatpush1.msra.mxu0 %v70
    %266 = vmatprep.subr.mxu0 0.0
    %267 = vmatpush1.msra.mxu0 0.0
    %268 = vmatprep.subr.mxu0 0.0
    %269 = vmatpush1.msra.mxu0 0.0
    %270 = vmatprep.subr.mxu0 0.0
    %271 = vmatpush1.msra.mxu0 0.0
    %272 = vmatprep.subr.mxu0 0.0
    %273 = vmatpush1.msra.mxu0 0.0
    %274 = vmatprep.subr.mxu0 0.0
    %275 = vmatpush1.msra.mxu0 0.0
    %276 = vmatprep.subr.mxu0 0.0
    %277 = vmatpush1.msra.mxu0 0.0
    %278 = vmatprep.subr.mxu0 0.0
    %279 = vmatpush1.msra.mxu0 0.0
    %280 = vmatprep.subr.mxu0 0.0
    %281 = vmatpush1.msra.mxu0 0.0
    %282 = vmatprep.subr.mxu0 0.0
    %283 = vmatpush1.msra.mxu0 0.0
    %284 = vmatprep.subr.mxu0 0.0
    %285 = vmatpush1.msra.mxu0 0.0
    %286 = vmatprep.subr.mxu0 0.0
    %287 = vmatpush1.msra.mxu0 0.0
    %288 = vmatprep.subr.mxu0 0.0
    %289 = vmatpush1.msra.mxu0 0.0
    %290 = vmatprep.subr.mxu0 0.0
    %291 = vmatpush1.msra.mxu0 0.0
    %292 = vmatprep.subr.mxu0 0.0
    %293 = vmatpush1.msra.mxu0 0.0
    %294 = vmatprep.subr.mxu0 0.0
    %295 = vmatpush1.msra.mxu0 0.0
    %296 = vmatprep.subr.mxu0 0.0
    %297 = vmatpush1.msra.mxu0 0.0
    %298 = vmatprep.mubr.f32.mxu0 0.0
    %299 = vmatmul.mubr.f32.gmra.mrb[0].mxu0 %v233
    %v300 = vpop.f32.mrb[0].mxu0
    %v301 = vadd.f32 0.0, %v300
    %v302 = vpop.f32.mrb[0].mxu0
    %303 = vdwg.mxu0
    %s304 = scalar_lea.vmem [#allocation2], 24
    %v305 = vld [vmem:[%s304] sm:$0xff]
    %306 = vmatprep.subr.mxu0 0.0
    %307 = vmatpush1.msra.mxu0 %v55
    %308 = vmatprep.subr.mxu0 0.0
    %309 = vmatpush1.msra.mxu0 %v56
    %310 = vmatprep.subr.mxu0 0.0
    %311 = vmatpush1.msra.mxu0 %v57
    %312 = vmatprep.subr.mxu0 0.0
    %313 = vmatpush1.msra.mxu0 %v58
    %314 = vmatprep.subr.mxu0 0.0
    %315 = vmatpush1.msra.mxu0 %v59
    %316 = vmatprep.subr.mxu0 0.0
    %317 = vmatpush1.msra.mxu0 %v60
    %318 = vmatprep.subr.mxu0 0.0
    %319 = vmatpush1.msra.mxu0 %v61
    %320 = vmatprep.subr.mxu0 0.0
    %321 = vmatpush1.msra.mxu0 %v62
    %322 = vmatprep.subr.mxu0 0.0
    %323 = vmatpush1.msra.mxu0 %v63
    %324 = vmatprep.subr.mxu0 0.0
    %325 = vmatpush1.msra.mxu0 %v64
    %326 = vmatprep.subr.mxu0 0.0
    %327 = vmatpush1.msra.mxu0 %v65
    %328 = vmatprep.subr.mxu0 0.0
    %329 = vmatpush1.msra.mxu0 %v66
    %330 = vmatprep.subr.mxu0 0.0
    %331 = vmatpush1.msra.mxu0 %v67
    %332 = vmatprep.subr.mxu0 0.0
    %333 = vmatpush1.msra.mxu0 %v68
    %334 = vmatprep.subr.mxu0 0.0
    %335 = vmatpush1.msra.mxu0 %v69
    %336 = vmatprep.subr.mxu0 0.0
    %337 = vmatpush1.msra.mxu0 %v70
    %338 = vmatprep.subr.mxu0 0.0
    %339 = vmatpush1.msra.mxu0 0.0
    %340 = vmatprep.subr.mxu0 0.0
    %341 = vmatpush1.msra.mxu0 0.0
    %342 = vmatprep.subr.mxu0 0.0
    %343 = vmatpush1.msra.mxu0 0.0
    %344 = vmatprep.subr.mxu0 0.0
    %345 = vmatpush1.msra.mxu0 0.0
    %346 = vmatprep.subr.mxu0 0.0
    %347 = vmatpush1.msra.mxu0 0.0
    %348 = vmatprep.subr.mxu0 0.0
    %349 = vmatpush1.msra.mxu0 0.0
    %350 = vmatprep.subr.mxu0 0.0
    %351 = vmatpush1.msra.mxu0 0.0
    %352 = vmatprep.subr.mxu0 0.0
    %353 = vmatpush1.msra.mxu0 0.0
    %354 = vmatprep.subr.mxu0 0.0
    %355 = vmatpush1.msra.mxu0 0.0
    %356 = vmatprep.subr.mxu0 0.0
    %357 = vmatpush1.msra.mxu0 0.0
    %358 = vmatprep.subr.mxu0 0.0
    %359 = vmatpush1.msra.mxu0 0.0
    %360 = vmatprep.subr.mxu0 0.0
    %361 = vmatpush1.msra.mxu0 0.0
    %362 = vmatprep.subr.mxu0 0.0
    %363 = vmatpush1.msra.mxu0 0.0
    %364 = vmatprep.subr.mxu0 0.0
    %365 = vmatpush1.msra.mxu0 0.0
    %366 = vmatprep.subr.mxu0 0.0
    %367 = vmatpush1.msra.mxu0 0.0
    %368 = vmatprep.subr.mxu0 0.0
    %369 = vmatpush1.msra.mxu0 0.0
    %370 = vmatprep.mubr.f32.mxu0 0.0
    %371 = vmatmul.mubr.f32.gmra.mrb[0].mxu0 %v305
    %v372 = vpop.f32.mrb[0].mxu0
    %v373 = vadd.f32 0.0, %v372
    %v374 = vpop.f32.mrb[0].mxu0
    %375 = vdwg.mxu0
    %v376 = vmax.f32 %v301, %v373
    %v377 = vadd.f32 %v376, %v220
    %v378 = vmax.f32 %v377, 0.0
    %s379 = scalar_lea.vmem [#allocation5], 64
    %v380 = vld [vmem:[%s379] sm:$0xff]
    %v381 = vld [vmem:[%s379 + $0x8] sm:$0xff]
    %v382 = vld [vmem:[%s379 + $0x10] sm:$0xff]
    %v383 = vld [vmem:[%s379 + $0x18] sm:$0xff]
    %v384 = vld [vmem:[%s379 + $0x20] sm:$0xff]
    %v385 = vld [vmem:[%s379 + $0x28] sm:$0xff]
    %v386 = vld [vmem:[%s379 + $0x30] sm:$0xff]
    %v387 = vld [vmem:[%s379 + $0x38] sm:$0xff]
    %vm388 = vcmask 523264
    %v390 = vsel %vm388, %v378, 0
    %392 = vmatprep.subr.mxu0 0.0
    %393 = vmatpush1.msra.mxu0 %v380
    %394 = vmatprep.subr.mxu0 0.0
    %395 = vmatpush1.msra.mxu0 %v381
    %396 = vmatprep.subr.mxu0 0.0
    %397 = vmatpush1.msra.mxu0 %v382
    %398 = vmatprep.subr.mxu0 0.0
    %399 = vmatpush1.msra.mxu0 %v383
    %400 = vmatprep.subr.mxu0 0.0
    %401 = vmatpush1.msra.mxu0 %v384
    %402 = vmatprep.subr.mxu0 0.0
    %403 = vmatpush1.msra.mxu0 %v385
    %404 = vmatprep.subr.mxu0 0.0
    %405 = vmatpush1.msra.mxu0 %v386
    %406 = vmatprep.subr.mxu0 0.0
    %407 = vmatpush1.msra.mxu0 %v387
    %408 = vmatprep.subr.mxu0 0.0
    %409 = vmatpush1.msra.mxu0 0.0
    %410 = vmatprep.subr.mxu0 0.0
    %411 = vmatpush1.msra.mxu0 0.0
    %412 = vmatprep.subr.mxu0 0.0
    %413 = vmatpush1.msra.mxu0 0.0
    %414 = vmatprep.subr.mxu0 0.0
    %415 = vmatpush1.msra.mxu0 0.0
    %416 = vmatprep.subr.mxu0 0.0
    %417 = vmatpush1.msra.mxu0 0.0
    %418 = vmatprep.subr.mxu0 0.0
    %419 = vmatpush1.msra.mxu0 0.0
    %420 = vmatprep.subr.mxu0 0.0
    %421 = vmatpush1.msra.mxu0 0.0
    %422 = vmatprep.subr.mxu0 0.0
    %423 = vmatpush1.msra.mxu0 0.0
    %424 = vmatprep.subr.mxu0 0.0
    %425 = vmatpush1.msra.mxu0 0.0
    %426 = vmatprep.subr.mxu0 0.0
    %427 = vmatpush1.msra.mxu0 0.0
    %428 = vmatprep.subr.mxu0 0.0
    %429 = vmatpush1.msra.mxu0 0.0
    %430 = vmatprep.subr.mxu0 0.0
    %431 = vmatpush1.msra.mxu0 0.0
    %432 = vmatprep.subr.mxu0 0.0
    %433 = vmatpush1.msra.mxu0 0.0
    %434 = vmatprep.subr.mxu0 0.0
    %435 = vmatpush1.msra.mxu0 0.0
    %436 = vmatprep.subr.mxu0 0.0
    %437 = vmatpush1.msra.mxu0 0.0
    %438 = vmatprep.subr.mxu0 0.0
    %439 = vmatpush1.msra.mxu0 0.0
    %440 = vmatprep.subr.mxu0 0.0
    %441 = vmatpush1.msra.mxu0 0.0
    %442 = vmatprep.subr.mxu0 0.0
    %443 = vmatpush1.msra.mxu0 0.0
    %444 = vmatprep.subr.mxu0 0.0
    %445 = vmatpush1.msra.mxu0 0.0
    %446 = vmatprep.subr.mxu0 0.0
    %447 = vmatpush1.msra.mxu0 0.0
    %448 = vmatprep.subr.mxu0 0.0
    %449 = vmatpush1.msra.mxu0 0.0
    %450 = vmatprep.subr.mxu0 0.0
    %451 = vmatpush1.msra.mxu0 0.0
    %452 = vmatprep.subr.mxu0 0.0
    %453 = vmatpush1.msra.mxu0 0.0
    %454 = vmatprep.subr.mxu0 0.0
    %455 = vmatpush1.msra.mxu0 0.0
    %456 = vmatprep.mubr.f32.mxu0 0.0
    %457 = vmatmul.mubr.f32.gmra.mrb[0].mxu0 %v390
    %v458 = vpop.f32.mrb[0].mxu0
    %v459 = vadd.f32 0.0, %v458
    %v460 = vpop.f32.mrb[0].mxu0
    %461 = vdwg.mxu0
    %v463 = vsel %vm388, %v223, 0
    %465 = vmatprep.subr.mxu0 0.0
    %466 = vmatpush1.msra.mxu0 %v224
    %467 = vmatprep.subr.mxu0 0.0
    %468 = vmatpush1.msra.mxu0 %v225
    %469 = vmatprep.subr.mxu0 0.0
    %470 = vmatpush1.msra.mxu0 %v226
    %471 = vmatprep.subr.mxu0 0.0
    %472 = vmatpush1.msra.mxu0 %v227
    %473 = vmatprep.subr.mxu0 0.0
    %474 = vmatpush1.msra.mxu0 %v228
    %475 = vmatprep.subr.mxu0 0.0
    %476 = vmatpush1.msra.mxu0 %v229
    %477 = vmatprep.subr.mxu0 0.0
    %478 = vmatpush1.msra.mxu0 %v230
    %479 = vmatprep.subr.mxu0 0.0
    %480 = vmatpush1.msra.mxu0 %v231
    %481 = vmatprep.subr.mxu0 0.0
    %482 = vmatpush1.msra.mxu0 0.0
    %483 = vmatprep.subr.mxu0 0.0
    %484 = vmatpush1.msra.mxu0 0.0
    %485 = vmatprep.subr.mxu0 0.0
    %486 = vmatpush1.msra.mxu0 0.0
    %487 = vmatprep.subr.mxu0 0.0
    %488 = vmatpush1.msra.mxu0 0.0
    %489 = vmatprep.subr.mxu0 0.0
    %490 = vmatpush1.msra.mxu0 0.0
    %491 = vmatprep.subr.mxu0 0.0
    %492 = vmatpush1.msra.mxu0 0.0
    %493 = vmatprep.subr.mxu0 0.0
    %494 = vmatpush1.msra.mxu0 0.0
    %495 = vmatprep.subr.mxu0 0.0
    %496 = vmatpush1.msra.mxu0 0.0
    %497 = vmatprep.subr.mxu0 0.0
    %498 = vmatpush1.msra.mxu0 0.0
    %499 = vmatprep.subr.mxu0 0.0
    %500 = vmatpush1.msra.mxu0 0.0
    %501 = vmatprep.subr.mxu0 0.0
    %502 = vmatpush1.msra.mxu0 0.0
    %503 = vmatprep.subr.mxu0 0.0
    %504 = vmatpush1.msra.mxu0 0.0
    %505 = vmatprep.subr.mxu0 0.0
    %506 = vmatpush1.msra.mxu0 0.0
    %507 = vmatprep.subr.mxu0 0.0
    %508 = vmatpush1.msra.mxu0 0.0
    %509 = vmatprep.subr.mxu0 0.0
    %510 = vmatpush1.msra.mxu0 0.0
    %511 = vmatprep.subr.mxu0 0.0
    %512 = vmatpush1.msra.mxu0 0.0
    %513 = vmatprep.subr.mxu0 0.0
    %514 = vmatpush1.msra.mxu0 0.0
    %515 = vmatprep.subr.mxu0 0.0
    %516 = vmatpush1.msra.mxu0 0.0
    %517 = vmatprep.subr.mxu0 0.0
    %518 = vmatpush1.msra.mxu0 0.0
    %519 = vmatprep.subr.mxu0 0.0
    %520 = vmatpush1.msra.mxu0 0.0
    %521 = vmatprep.subr.mxu0 0.0
    %522 = vmatpush1.msra.mxu0 0.0
    %523 = vmatprep.subr.mxu0 0.0
    %524 = vmatpush1.msra.mxu0 0.0
    %525 = vmatprep.subr.mxu0 0.0
    %526 = vmatpush1.msra.mxu0 0.0
    %527 = vmatprep.subr.mxu0 0.0
    %528 = vmatpush1.msra.mxu0 0.0
    %529 = vmatprep.mubr.f32.mxu0 0.0
    %530 = vmatmul.mubr.f32.gmra.mrb[0].mxu0 %v463
    %v531 = vpop.f32.mrb[0].mxu0
    %v532 = vadd.f32 %v459, %v531
    %v533 = vpop.f32.mrb[0].mxu0
    %534 = vdwg.mxu0
    %s535 = scalar_lea.vmem [#allocation2], 32
    %v536 = vld [vmem:[%s535] sm:$0xff]
    %537 = vmatprep.subr.mxu0 0.0
    %538 = vmatpush1.msra.mxu0 %v55
    %539 = vmatprep.subr.mxu0 0.0
    %540 = vmatpush1.msra.mxu0 %v56
    %541 = vmatprep.subr.mxu0 0.0
    %542 = vmatpush1.msra.mxu0 %v57
    %543 = vmatprep.subr.mxu0 0.0
    %544 = vmatpush1.msra.mxu0 %v58
    %545 = vmatprep.subr.mxu0 0.0
    %546 = vmatpush1.msra.mxu0 %v59
    %547 = vmatprep.subr.mxu0 0.0
    %548 = vmatpush1.msra.mxu0 %v60
    %549 = vmatprep.subr.mxu0 0.0
    %550 = vmatpush1.msra.mxu0 %v61
    %551 = vmatprep.subr.mxu0 0.0
    %552 = vmatpush1.msra.mxu0 %v62
    %553 = vmatprep.subr.mxu0 0.0
    %554 = vmatpush1.msra.mxu0 %v63
    %555 = vmatprep.subr.mxu0 0.0
    %556 = vmatpush1.msra.mxu0 %v64
    %557 = vmatprep.subr.mxu0 0.0
    %558 = vmatpush1.msra.mxu0 %v65
    %559 = vmatprep.subr.mxu0 0.0
    %560 = vmatpush1.msra.mxu0 %v66
    %561 = vmatprep.subr.mxu0 0.0
    %562 = vmatpush1.msra.mxu0 %v67
    %563 = vmatprep.subr.mxu0 0.0
    %564 = vmatpush1.msra.mxu0 %v68
    %565 = vmatprep.subr.mxu0 0.0
    %566 = vmatpush1.msra.mxu0 %v69
    %567 = vmatprep.subr.mxu0 0.0
    %568 = vmatpush1.msra.mxu0 %v70
    %569 = vmatprep.subr.mxu0 0.0
    %570 = vmatpush1.msra.mxu0 0.0
    %571 = vmatprep.subr.mxu0 0.0
    %572 = vmatpush1.msra.mxu0 0.0
    %573 = vmatprep.subr.mxu0 0.0
    %574 = vmatpush1.msra.mxu0 0.0
    %575 = vmatprep.subr.mxu0 0.0
    %576 = vmatpush1.msra.mxu0 0.0
    %577 = vmatprep.subr.mxu0 0.0
    %578 = vmatpush1.msra.mxu0 0.0
    %579 = vmatprep.subr.mxu0 0.0
    %580 = vmatpush1.msra.mxu0 0.0
    %581 = vmatprep.subr.mxu0 0.0
    %582 = vmatpush1.msra.mxu0 0.0
    %583 = vmatprep.subr.mxu0 0.0
    %584 = vmatpush1.msra.mxu0 0.0
    %585 = vmatprep.subr.mxu0 0.0
    %586 = vmatpush1.msra.mxu0 0.0
    %587 = vmatprep.subr.mxu0 0.0
    %588 = vmatpush1.msra.mxu0 0.0
    %589 = vmatprep.subr.mxu0 0.0
    %590 = vmatpush1.msra.mxu0 0.0
    %591 = vmatprep.subr.mxu0 0.0
    %592 = vmatpush1.msra.mxu0 0.0
    %593 = vmatprep.subr.mxu0 0.0
    %594 = vmatpush1.msra.mxu0 0.0
    %595 = vmatprep.subr.mxu0 0.0
    %596 = vmatpush1.msra.mxu0 0.0
    %597 = vmatprep.subr.mxu0 0.0
    %598 = vmatpush1.msra.mxu0 0.0
    %599 = vmatprep.subr.mxu0 0.0
    %600 = vmatpush1.msra.mxu0 0.0
    %601 = vmatprep.mubr.f32.mxu0 0.0
    %602 = vmatmul.mubr.f32.gmra.mrb[0].mxu0 %v536
    %v603 = vpop.f32.mrb[0].mxu0
    %v604 = vadd.f32 0.0, %v603
    %v605 = vpop.f32.mrb[0].mxu0
    %606 = vdwg.mxu0
    %s607 = scalar_lea.vmem [#allocation2], 40
    %v608 = vld [vmem:[%s607] sm:$0xff]
    %609 = vmatprep.subr.mxu0 0.0
    %610 = vmatpush1.msra.mxu0 %v55
    %611 = vmatprep.subr.mxu0 0.0
    %612 = vmatpush1.msra.mxu0 %v56
    %613 = vmatprep.subr.mxu0 0.0
    %614 = vmatpush1.msra.mxu0 %v57
    %615 = vmatprep.subr.mxu0 0.0
    %616 = vmatpush1.msra.mxu0 %v58
    %617 = vmatprep.subr.mxu0 0.0
    %618 = vmatpush1.msra.mxu0 %v59
    %619 = vmatprep.subr.mxu0 0.0
    %620 = vmatpush1.msra.mxu0 %v60
    %621 = vmatprep.subr.mxu0 0.0
    %622 = vmatpush1.msra.mxu0 %v61
    %623 = vmatprep.subr.mxu0 0.0
    %624 = vmatpush1.msra.mxu0 %v62
    %625 = vmatprep.subr.mxu0 0.0
    %626 = vmatpush1.msra.mxu0 %v63
    %627 = vmatprep.subr.mxu0 0.0
    %628 = vmatpush1.msra.mxu0 %v64
    %629 = vmatprep.subr.mxu0 0.0
    %630 = vmatpush1.msra.mxu0 %v65
    %631 = vmatprep.subr.mxu0 0.0
    %632 = vmatpush1.msra.mxu0 %v66
    %633 = vmatprep.subr.mxu0 0.0
    %634 = vmatpush1.msra.mxu0 %v67
    %635 = vmatprep.subr.mxu0 0.0
    %636 = vmatpush1.msra.mxu0 %v68
    %637 = vmatprep.subr.mxu0 0.0
    %638 = vmatpush1.msra.mxu0 %v69
    %639 = vmatprep.subr.mxu0 0.0
    %640 = vmatpush1.msra.mxu0 %v70
    %641 = vmatprep.subr.mxu0 0.0
    %642 = vmatpush1.msra.mxu0 0.0
    %643 = vmatprep.subr.mxu0 0.0
    %644 = vmatpush1.msra.mxu0 0.0
    %645 = vmatprep.subr.mxu0 0.0
    %646 = vmatpush1.msra.mxu0 0.0
    %647 = vmatprep.subr.mxu0 0.0
    %648 = vmatpush1.msra.mxu0 0.0
    %649 = vmatprep.subr.mxu0 0.0
    %650 = vmatpush1.msra.mxu0 0.0
    %651 = vmatprep.subr.mxu0 0.0
    %652 = vmatpush1.msra.mxu0 0.0
    %653 = vmatprep.subr.mxu0 0.0
    %654 = vmatpush1.msra.mxu0 0.0
    %655 = vmatprep.subr.mxu0 0.0
    %656 = vmatpush1.msra.mxu0 0.0
    %657 = vmatprep.subr.mxu0 0.0
    %658 = vmatpush1.msra.mxu0 0.0
    %659 = vmatprep.subr.mxu0 0.0
    %660 = vmatpush1.msra.mxu0 0.0
    %661 = vmatprep.subr.mxu0 0.0
    %662 = vmatpush1.msra.mxu0 0.0
    %663 = vmatprep.subr.mxu0 0.0
    %664 = vmatpush1.msra.mxu0 0.0
    %665 = vmatprep.subr.mxu0 0.0
    %666 = vmatpush1.msra.mxu0 0.0
    %667 = vmatprep.subr.mxu0 0.0
    %668 = vmatpush1.msra.mxu0 0.0
    %669 = vmatprep.subr.mxu0 0.0
    %670 = vmatpush1.msra.mxu0 0.0
    %671 = vmatprep.subr.mxu0 0.0
    %672 = vmatpush1.msra.mxu0 0.0
    %673 = vmatprep.mubr.f32.mxu0 0.0
    %674 = vmatmul.mubr.f32.gmra.mrb[0].mxu0 %v608
    %v675 = vpop.f32.mrb[0].mxu0
    %v676 = vadd.f32 0.0, %v675
    %v677 = vpop.f32.mrb[0].mxu0
    %678 = vdwg.mxu0
    %v679 = vmax.f32 %v604, %v676
    %v680 = vadd.f32 %v679, %v220
    %v681 = vmax.f32 %v680, 0.0
    %s682 = scalar_lea.vmem [#allocation5], 128
    %v683 = vld [vmem:[%s682] sm:$0xff]
    %v684 = vld [vmem:[%s682 + $0x8] sm:$0xff]
    %v685 = vld [vmem:[%s682 + $0x10] sm:$0xff]
    %v686 = vld [vmem:[%s682 + $0x18] sm:$0xff]
    %v687 = vld [vmem:[%s682 + $0x20] sm:$0xff]
    %v688 = vld [vmem:[%s682 + $0x28] sm:$0xff]
    %v689 = vld [vmem:[%s682 + $0x30] sm:$0xff]
    %v690 = vld [vmem:[%s682 + $0x38] sm:$0xff]
    %v692 = vsel %vm388, %v681, 0
    %694 = vmatprep.subr.mxu0 0.0
    %695 = vmatpush1.msra.mxu0 %v683
    %696 = vmatprep.subr.mxu0 0.0
    %697 = vmatpush1.msra.mxu0 %v684
    %698 = vmatprep.subr.mxu0 0.0
    %699 = vmatpush1.msra.mxu0 %v685
    %700 = vmatprep.subr.mxu0 0.0
    %701 = vmatpush1.msra.mxu0 %v686
    %702 = vmatprep.subr.mxu0 0.0
    %703 = vmatpush1.msra.mxu0 %v687
    %704 = vmatprep.subr.mxu0 0.0
    %705 = vmatpush1.msra.mxu0 %v688
    %706 = vmatprep.subr.mxu0 0.0
    %707 = vmatpush1.msra.mxu0 %v689
    %708 = vmatprep.subr.mxu0 0.0
    %709 = vmatpush1.msra.mxu0 %v690
    %710 = vmatprep.subr.mxu0 0.0
    %711 = vmatpush1.msra.mxu0 0.0
    %712 = vmatprep.subr.mxu0 0.0
    %713 = vmatpush1.msra.mxu0 0.0
    %714 = vmatprep.subr.mxu0 0.0
    %715 = vmatpush1.msra.mxu0 0.0
    %716 = vmatprep.subr.mxu0 0.0
    %717 = vmatpush1.msra.mxu0 0.0
    %718 = vmatprep.subr.mxu0 0.0
    %719 = vmatpush1.msra.mxu0 0.0
    %720 = vmatprep.subr.mxu0 0.0
    %721 = vmatpush1.msra.mxu0 0.0
    %722 = vmatprep.subr.mxu0 0.0
    %723 = vmatpush1.msra.mxu0 0.0
    %724 = vmatprep.subr.mxu0 0.0
    %725 = vmatpush1.msra.mxu0 0.0
    %726 = vmatprep.subr.mxu0 0.0
    %727 = vmatpush1.msra.mxu0 0.0
    %728 = vmatprep.subr.mxu0 0.0
    %729 = vmatpush1.msra.mxu0 0.0
    %730 = vmatprep.subr.mxu0 0.0
    %731 = vmatpush1.msra.mxu0 0.0
    %732 = vmatprep.subr.mxu0 0.0
    %733 = vmatpush1.msra.mxu0 0.0
    %734 = vmatprep.subr.mxu0 0.0
    %735 = vmatpush1.msra.mxu0 0.0
    %736 = vmatprep.subr.mxu0 0.0
    %737 = vmatpush1.msra.mxu0 0.0
    %738 = vmatprep.subr.mxu0 0.0
    %739 = vmatpush1.msra.mxu0 0.0
    %740 = vmatprep.subr.mxu0 0.0
    %741 = vmatpush1.msra.mxu0 0.0
    %742 = vmatprep.subr.mxu0 0.0
    %743 = vmatpush1.msra.mxu0 0.0
    %744 = vmatprep.subr.mxu0 0.0
    %745 = vmatpush1.msra.mxu0 0.0
    %746 = vmatprep.subr.mxu0 0.0
    %747 = vmatpush1.msra.mxu0 0.0
    %748 = vmatprep.subr.mxu0 0.0
    %749 = vmatpush1.msra.mxu0 0.0
    %750 = vmatprep.subr.mxu0 0.0
    %751 = vmatpush1.msra.mxu0 0.0
    %752 = vmatprep.subr.mxu0 0.0
    %753 = vmatpush1.msra.mxu0 0.0
    %754 = vmatprep.subr.mxu0 0.0
    %755 = vmatpush1.msra.mxu0 0.0
    %756 = vmatprep.subr.mxu0 0.0
    %757 = vmatpush1.msra.mxu0 0.0
    %758 = vmatprep.mubr.f32.mxu0 0.0
    %759 = vmatmul.mubr.f32.gmra.mrb[0].mxu0 %v692
    %v760 = vpop.f32.mrb[0].mxu0
    %v761 = vadd.f32 0.0, %v760
    %v762 = vpop.f32.mrb[0].mxu0
    %763 = vdwg.mxu0
    %v764 = vadd.f32 %v532, %v761
    %s765 = scalar_lea.vmem [#allocation2], 48
    %v766 = vld [vmem:[%s765] sm:$0xff]
    %767 = vmatprep.subr.mxu0 0.0
    %768 = vmatpush1.msra.mxu0 %v55
    %769 = vmatprep.subr.mxu0 0.0
    %770 = vmatpush1.msra.mxu0 %v56
    %771 = vmatprep.subr.mxu0 0.0
    %772 = vmatpush1.msra.mxu0 %v57
    %773 = vmatprep.subr.mxu0 0.0
    %774 = vmatpush1.msra.mxu0 %v58
    %775 = vmatprep.subr.mxu0 0.0
    %776 = vmatpush1.msra.mxu0 %v59
    %777 = vmatprep.subr.mxu0 0.0
    %778 = vmatpush1.msra.mxu0 %v60
    %779 = vmatprep.subr.mxu0 0.0
    %780 = vmatpush1.msra.mxu0 %v61
    %781 = vmatprep.subr.mxu0 0.0
    %782 = vmatpush1.msra.mxu0 %v62
    %783 = vmatprep.subr.mxu0 0.0
    %784 = vmatpush1.msra.mxu0 %v63
    %785 = vmatprep.subr.mxu0 0.0
    %786 = vmatpush1.msra.mxu0 %v64
    %787 = vmatprep.subr.mxu0 0.0
    %788 = vmatpush1.msra.mxu0 %v65
    %789 = vmatprep.subr.mxu0 0.0
    %790 = vmatpush1.msra.mxu0 %v66
    %791 = vmatprep.subr.mxu0 0.0
    %792 = vmatpush1.msra.mxu0 %v67
    %793 = vmatprep.subr.mxu0 0.0
    %794 = vmatpush1.msra.mxu0 %v68
    %795 = vmatprep.subr.mxu0 0.0
    %796 = vmatpush1.msra.mxu0 %v69
    %797 = vmatprep.subr.mxu0 0.0
    %798 = vmatpush1.msra.mxu0 %v70
    %799 = vmatprep.subr.mxu0 0.0
    %800 = vmatpush1.msra.mxu0 0.0
    %801 = vmatprep.subr.mxu0 0.0
    %802 = vmatpush1.msra.mxu0 0.0
    %803 = vmatprep.subr.mxu0 0.0
    %804 = vmatpush1.msra.mxu0 0.0
    %805 = vmatprep.subr.mxu0 0.0
    %806 = vmatpush1.msra.mxu0 0.0
    %807 = vmatprep.subr.mxu0 0.0
    %808 = vmatpush1.msra.mxu0 0.0
    %809 = vmatprep.subr.mxu0 0.0
    %810 = vmatpush1.msra.mxu0 0.0
    %811 = vmatprep.subr.mxu0 0.0
    %812 = vmatpush1.msra.mxu0 0.0
    %813 = vmatprep.subr.mxu0 0.0
    %814 = vmatpush1.msra.mxu0 0.0
    %815 = vmatprep.subr.mxu0 0.0
    %816 = vmatpush1.msra.mxu0 0.0
    %817 = vmatprep.subr.mxu0 0.0
    %818 = vmatpush1.msra.mxu0 0.0
    %819 = vmatprep.subr.mxu0 0.0
    %820 = vmatpush1.msra.mxu0 0.0
    %821 = vmatprep.subr.mxu0 0.0
    %822 = vmatpush1.msra.mxu0 0.0
    %823 = vmatprep.subr.mxu0 0.0
    %824 = vmatpush1.msra.mxu0 0.0
    %825 = vmatprep.subr.mxu0 0.0
    %826 = vmatpush1.msra.mxu0 0.0
    %827 = vmatprep.subr.mxu0 0.0
    %828 = vmatpush1.msra.mxu0 0.0
    %829 = vmatprep.subr.mxu0 0.0
    %830 = vmatpush1.msra.mxu0 0.0
    %831 = vmatprep.mubr.f32.mxu0 0.0
    %832 = vmatmul.mubr.f32.gmra.mrb[0].mxu0 %v766
    %v833 = vpop.f32.mrb[0].mxu0
    %v834 = vadd.f32 0.0, %v833
    %v835 = vpop.f32.mrb[0].mxu0
    %836 = vdwg.mxu0
    %s837 = scalar_lea.vmem [#allocation2], 56
    %v838 = vld [vmem:[%s837] sm:$0xff]
    %839 = vmatprep.subr.mxu0 0.0
    %840 = vmatpush1.msra.mxu0 %v55
    %841 = vmatprep.subr.mxu0 0.0
    %842 = vmatpush1.msra.mxu0 %v56
    %843 = vmatprep.subr.mxu0 0.0
    %844 = vmatpush1.msra.mxu0 %v57
    %845 = vmatprep.subr.mxu0 0.0
    %846 = vmatpush1.msra.mxu0 %v58
    %847 = vmatprep.subr.mxu0 0.0
    %848 = vmatpush1.msra.mxu0 %v59
    %849 = vmatprep.subr.mxu0 0.0
    %850 = vmatpush1.msra.mxu0 %v60
    %851 = vmatprep.subr.mxu0 0.0
    %852 = vmatpush1.msra.mxu0 %v61
    %853 = vmatprep.subr.mxu0 0.0
    %854 = vmatpush1.msra.mxu0 %v62
    %855 = vmatprep.subr.mxu0 0.0
    %856 = vmatpush1.msra.mxu0 %v63
    %857 = vmatprep.subr.mxu0 0.0
    %858 = vmatpush1.msra.mxu0 %v64
    %859 = vmatprep.subr.mxu0 0.0
    %860 = vmatpush1.msra.mxu0 %v65
    %861 = vmatprep.subr.mxu0 0.0
    %862 = vmatpush1.msra.mxu0 %v66
    %863 = vmatprep.subr.mxu0 0.0
    %864 = vmatpush1.msra.mxu0 %v67
    %865 = vmatprep.subr.mxu0 0.0
    %866 = vmatpush1.msra.mxu0 %v68
    %867 = vmatprep.subr.mxu0 0.0
    %868 = vmatpush1.msra.mxu0 %v69
    %869 = vmatprep.subr.mxu0 0.0
    %870 = vmatpush1.msra.mxu0 %v70
    %871 = vmatprep.subr.mxu0 0.0
    %872 = vmatpush1.msra.mxu0 0.0
    %873 = vmatprep.subr.mxu0 0.0
    %874 = vmatpush1.msra.mxu0 0.0
    %875 = vmatprep.subr.mxu0 0.0
    %876 = vmatpush1.msra.mxu0 0.0
    %877 = vmatprep.subr.mxu0 0.0
    %878 = vmatpush1.msra.mxu0 0.0
    %879 = vmatprep.subr.mxu0 0.0
    %880 = vmatpush1.msra.mxu0 0.0
    %881 = vmatprep.subr.mxu0 0.0
    %882 = vmatpush1.msra.mxu0 0.0
    %883 = vmatprep.subr.mxu0 0.0
    %884 = vmatpush1.msra.mxu0 0.0
    %885 = vmatprep.subr.mxu0 0.0
    %886 = vmatpush1.msra.mxu0 0.0
    %887 = vmatprep.subr.mxu0 0.0
    %888 = vmatpush1.msra.mxu0 0.0
    %889 = vmatprep.subr.mxu0 0.0
    %890 = vmatpush1.msra.mxu0 0.0
    %891 = vmatprep.subr.mxu0 0.0
    %892 = vmatpush1.msra.mxu0 0.0
    %893 = vmatprep.subr.mxu0 0.0
    %894 = vmatpush1.msra.mxu0 0.0
    %895 = vmatprep.subr.mxu0 0.0
    %896 = vmatpush1.msra.mxu0 0.0
    %897 = vmatprep.subr.mxu0 0.0
    %898 = vmatpush1.msra.mxu0 0.0
    %899 = vmatprep.subr.mxu0 0.0
    %900 = vmatpush1.msra.mxu0 0.0
    %901 = vmatprep.subr.mxu0 0.0
    %902 = vmatpush1.msra.mxu0 0.0
    %903 = vmatprep.mubr.f32.mxu0 0.0
    %904 = vmatmul.mubr.f32.gmra.mrb[0].mxu0 %v838
    %v905 = vpop.f32.mrb[0].mxu0
    %v906 = vadd.f32 0.0, %v905
    %v907 = vpop.f32.mrb[0].mxu0
    %908 = vdwg.mxu0
    %v909 = vmax.f32 %v834, %v906
    %v910 = vadd.f32 %v909, %v220
    %v911 = vmax.f32 %v910, 0.0
    %s912 = scalar_lea.vmem [#allocation5], 192
    %v913 = vld [vmem:[%s912] sm:$0xff]
    %v914 = vld [vmem:[%s912 + $0x8] sm:$0xff]
    %v915 = vld [vmem:[%s912 + $0x10] sm:$0xff]
    %v916 = vld [vmem:[%s912 + $0x18] sm:$0xff]
    %v917 = vld [vmem:[%s912 + $0x20] sm:$0xff]
    %v918 = vld [vmem:[%s912 + $0x28] sm:$0xff]
    %v919 = vld [vmem:[%s912 + $0x30] sm:$0xff]
    %v920 = vld [vmem:[%s912 + $0x38] sm:$0xff]
    %v922 = vsel %vm388, %v911, 0
    %924 = vmatprep.subr.mxu0 0.0
    %925 = vmatpush1.msra.mxu0 %v913
    %926 = vmatprep.subr.mxu0 0.0
    %927 = vmatpush1.msra.mxu0 %v914
    %928 = vmatprep.subr.mxu0 0.0
    %929 = vmatpush1.msra.mxu0 %v915
    %930 = vmatprep.subr.mxu0 0.0
    %931 = vmatpush1.msra.mxu0 %v916
    %932 = vmatprep.subr.mxu0 0.0
    %933 = vmatpush1.msra.mxu0 %v917
    %934 = vmatprep.subr.mxu0 0.0
    %935 = vmatpush1.msra.mxu0 %v918
    %936 = vmatprep.subr.mxu0 0.0
    %937 = vmatpush1.msra.mxu0 %v919
    %938 = vmatprep.subr.mxu0 0.0
    %939 = vmatpush1.msra.mxu0 %v920
    %940 = vmatprep.subr.mxu0 0.0
    %941 = vmatpush1.msra.mxu0 0.0
    %942 = vmatprep.subr.mxu0 0.0
    %943 = vmatpush1.msra.mxu0 0.0
    %944 = vmatprep.subr.mxu0 0.0
    %945 = vmatpush1.msra.mxu0 0.0
    %946 = vmatprep.subr.mxu0 0.0
    %947 = vmatpush1.msra.mxu0 0.0
    %948 = vmatprep.subr.mxu0 0.0
    %949 = vmatpush1.msra.mxu0 0.0
    %950 = vmatprep.subr.mxu0 0.0
    %951 = vmatpush1.msra.mxu0 0.0
    %952 = vmatprep.subr.mxu0 0.0
    %953 = vmatpush1.msra.mxu0 0.0
    %954 = vmatprep.subr.mxu0 0.0
    %955 = vmatpush1.msra.mxu0 0.0
    %956 = vmatprep.subr.mxu0 0.0
    %957 = vmatpush1.msra.mxu0 0.0
    %958 = vmatprep.subr.mxu0 0.0
    %959 = vmatpush1.msra.mxu0 0.0
    %960 = vmatprep.subr.mxu0 0.0
    %961 = vmatpush1.msra.mxu0 0.0
    %962 = vmatprep.subr.mxu0 0.0
    %963 = vmatpush1.msra.mxu0 0.0
    %964 = vmatprep.subr.mxu0 0.0
    %965 = vmatpush1.msra.mxu0 0.0
    %966 = vmatprep.subr.mxu0 0.0
    %967 = vmatpush1.msra.mxu0 0.0
    %968 = vmatprep.subr.mxu0 0.0
    %969 = vmatpush1.msra.mxu0 0.0
    %970 = vmatprep.subr.mxu0 0.0
    %971 = vmatpush1.msra.mxu0 0.0
    %972 = vmatprep.subr.mxu0 0.0
    %973 = vmatpush1.msra.mxu0 0.0
    %974 = vmatprep.subr.mxu0 0.0
    %975 = vmatpush1.msra.mxu0 0.0
    %976 = vmatprep.subr.mxu0 0.0
    %977 = vmatpush1.msra.mxu0 0.0
    %978 = vmatprep.subr.mxu0 0.0
    %979 = vmatpush1.msra.mxu0 0.0
    %980 = vmatprep.subr.mxu0 0.0
    %981 = vmatpush1.msra.mxu0 0.0
    %982 = vmatprep.subr.mxu0 0.0
    %983 = vmatpush1.msra.mxu0 0.0
    %984 = vmatprep.subr.mxu0 0.0
    %985 = vmatpush1.msra.mxu0 0.0
    %986 = vmatprep.subr.mxu0 0.0
    %987 = vmatpush1.msra.mxu0 0.0
    %988 = vmatprep.mubr.f32.mxu0 0.0
    %989 = vmatmul.mubr.f32.gmra.mrb[0].mxu0 %v922
    %v990 = vpop.f32.mrb[0].mxu0
    %v991 = vadd.f32 0.0, %v990
    %v992 = vpop.f32.mrb[0].mxu0
    %993 = vdwg.mxu0
    %v994 = vadd.f32 %v764, %v991
    %s995 = scalar_lea.vmem [#allocation2], 64
    %v996 = vld [vmem:[%s995] sm:$0xff]
    %997 = vmatprep.subr.mxu0 0.0
    %998 = vmatpush1.msra.mxu0 %v55
    %999 = vmatprep.subr.mxu0 0.0
    %1000 = vmatpush1.msra.mxu0 %v56
    %1001 = vmatprep.subr.mxu0 0.0
    %1002 = vmatpush1.msra.mxu0 %v57
    %1003 = vmatprep.subr.mxu0 0.0
    %1004 = vmatpush1.msra.mxu0 %v58
    %1005 = vmatprep.subr.mxu0 0.0
    %1006 = vmatpush1.msra.mxu0 %v59
    %1007 = vmatprep.subr.mxu0 0.0
    %1008 = vmatpush1.msra.mxu0 %v60
    %1009 = vmatprep.subr.mxu0 0.0
    %1010 = vmatpush1.msra.mxu0 %v61
    %1011 = vmatprep.subr.mxu0 0.0
    %1012 = vmatpush1.msra.mxu0 %v62
    %1013 = vmatprep.subr.mxu0 0.0
    %1014 = vmatpush1.msra.mxu0 %v63
    %1015 = vmatprep.subr.mxu0 0.0
    %1016 = vmatpush1.msra.mxu0 %v64
    %1017 = vmatprep.subr.mxu0 0.0
    %1018 = vmatpush1.msra.mxu0 %v65
    %1019 = vmatprep.subr.mxu0 0.0
    %1020 = vmatpush1.msra.mxu0 %v66
    %1021 = vmatprep.subr.mxu0 0.0
    %1022 = vmatpush1.msra.mxu0 %v67
    %1023 = vmatprep.subr.mxu0 0.0
    %1024 = vmatpush1.msra.mxu0 %v68
    %1025 = vmatprep.subr.mxu0 0.0
    %1026 = vmatpush1.msra.mxu0 %v69
    %1027 = vmatprep.subr.mxu0 0.0
    %1028 = vmatpush1.msra.mxu0 %v70
    %1029 = vmatprep.subr.mxu0 0.0
    %1030 = vmatpush1.msra.mxu0 0.0
    %1031 = vmatprep.subr.mxu0 0.0
    %1032 = vmatpush1.msra.mxu0 0.0
    %1033 = vmatprep.subr.mxu0 0.0
    %1034 = vmatpush1.msra.mxu0 0.0
    %1035 = vmatprep.subr.mxu0 0.0
    %1036 = vmatpush1.msra.mxu0 0.0
    %1037 = vmatprep.subr.mxu0 0.0
    %1038 = vmatpush1.msra.mxu0 0.0
    %1039 = vmatprep.subr.mxu0 0.0
    %1040 = vmatpush1.msra.mxu0 0.0
    %1041 = vmatprep.subr.mxu0 0.0
    %1042 = vmatpush1.msra.mxu0 0.0
    %1043 = vmatprep.subr.mxu0 0.0
    %1044 = vmatpush1.msra.mxu0 0.0
    %1045 = vmatprep.subr.mxu0 0.0
    %1046 = vmatpush1.msra.mxu0 0.0
    %1047 = vmatprep.subr.mxu0 0.0
    %1048 = vmatpush1.msra.mxu0 0.0
    %1049 = vmatprep.subr.mxu0 0.0
    %1050 = vmatpush1.msra.mxu0 0.0
    %1051 = vmatprep.subr.mxu0 0.0
    %1052 = vmatpush1.msra.mxu0 0.0
    %1053 = vmatprep.subr.mxu0 0.0
    %1054 = vmatpush1.msra.mxu0 0.0
    %1055 = vmatprep.subr.mxu0 0.0
    %1056 = vmatpush1.msra.mxu0 0.0
    %1057 = vmatprep.subr.mxu0 0.0
    %1058 = vmatpush1.msra.mxu0 0.0
    %1059 = vmatprep.subr.mxu0 0.0
    %1060 = vmatpush1.msra.mxu0 0.0
    %1061 = vmatprep.mubr.f32.mxu0 0.0
    %1062 = vmatmul.mubr.f32.gmra.mrb[0].mxu0 %v996
    %v1063 = vpop.f32.mrb[0].mxu0
    %v1064 = vadd.f32 0.0, %v1063
    %v1065 = vpop.f32.mrb[0].mxu0
    %1066 = vdwg.mxu0
    %s1067 = scalar_lea.vmem [#allocation2], 72
    %v1068 = vld [vmem:[%s1067] sm:$0xff]
    %1069 = vmatprep.subr.mxu0 0.0
    %1070 = vmatpush1.msra.mxu0 %v55
    %1071 = vmatprep.subr.mxu0 0.0
    %1072 = vmatpush1.msra.mxu0 %v56
    %1073 = vmatprep.subr.mxu0 0.0
    %1074 = vmatpush1.msra.mxu0 %v57
    %1075 = vmatprep.subr.mxu0 0.0
    %1076 = vmatpush1.msra.mxu0 %v58
    %1077 = vmatprep.subr.mxu0 0.0
    %1078 = vmatpush1.msra.mxu0 %v59
    %1079 = vmatprep.subr.mxu0 0.0
    %1080 = vmatpush1.msra.mxu0 %v60
    %1081 = vmatprep.subr.mxu0 0.0
    %1082 = vmatpush1.msra.mxu0 %v61
    %1083 = vmatprep.subr.mxu0 0.0
    %1084 = vmatpush1.msra.mxu0 %v62
    %1085 = vmatprep.subr.mxu0 0.0
    %1086 = vmatpush1.msra.mxu0 %v63
    %1087 = vmatprep.subr.mxu0 0.0
    %1088 = vmatpush1.msra.mxu0 %v64
    %1089 = vmatprep.subr.mxu0 0.0
    %1090 = vmatpush1.msra.mxu0 %v65
    %1091 = vmatprep.subr.mxu0 0.0
    %1092 = vmatpush1.msra.mxu0 %v66
    %1093 = vmatprep.subr.mxu0 0.0
    %1094 = vmatpush1.msra.mxu0 %v67
    %1095 = vmatprep.subr.mxu0 0.0
    %1096 = vmatpush1.msra.mxu0 %v68
    %1097 = vmatprep.subr.mxu0 0.0
    %1098 = vmatpush1.msra.mxu0 %v69
    %1099 = vmatprep.subr.mxu0 0.0
    %1100 = vmatpush1.msra.mxu0 %v70
    %1101 = vmatprep.subr.mxu0 0.0
    %1102 = vmatpush1.msra.mxu0 0.0
    %1103 = vmatprep.subr.mxu0 0.0
    %1104 = vmatpush1.msra.mxu0 0.0
    %1105 = vmatprep.subr.mxu0 0.0
    %1106 = vmatpush1.msra.mxu0 0.0
    %1107 = vmatprep.subr.mxu0 0.0
    %1108 = vmatpush1.msra.mxu0 0.0
    %1109 = vmatprep.subr.mxu0 0.0
    %1110 = vmatpush1.msra.mxu0 0.0
    %1111 = vmatprep.subr.mxu0 0.0
    %1112 = vmatpush1.msra.mxu0 0.0
    %1113 = vmatprep.subr.mxu0 0.0
    %1114 = vmatpush1.msra.mxu0 0.0
    %1115 = vmatprep.subr.mxu0 0.0
    %1116 = vmatpush1.msra.mxu0 0.0
    %1117 = vmatprep.subr.mxu0 0.0
    %1118 = vmatpush1.msra.mxu0 0.0
    %1119 = vmatprep.subr.mxu0 0.0
    %1120 = vmatpush1.msra.mxu0 0.0
    %1121 = vmatprep.subr.mxu0 0.0
    %1122 = vmatpush1.msra.mxu0 0.0
    %1123 = vmatprep.subr.mxu0 0.0
    %1124 = vmatpush1.msra.mxu0 0.0
    %1125 = vmatprep.subr.mxu0 0.0
    %1126 = vmatpush1.msra.mxu0 0.0
    %1127 = vmatprep.subr.mxu0 0.0
    %1128 = vmatpush1.msra.mxu0 0.0
    %1129 = vmatprep.subr.mxu0 0.0
    %1130 = vmatpush1.msra.mxu0 0.0
    %1131 = vmatprep.subr.mxu0 0.0
    %1132 = vmatpush1.msra.mxu0 0.0
    %1133 = vmatprep.mubr.f32.mxu0 0.0
    %1134 = vmatmul.mubr.f32.gmra.mrb[0].mxu0 %v1068
    %v1135 = vpop.f32.mrb[0].mxu0
    %v1136 = vadd.f32 0.0, %v1135
    %v1137 = vpop.f32.mrb[0].mxu0
    %1138 = vdwg.mxu0
    %v1139 = vmax.f32 %v1064, %v1136
    %v1140 = vadd.f32 %v1139, %v220
    %v1141 = vmax.f32 %v1140, 0.0
    %s1142 = scalar_lea.vmem [#allocation5], 256
    %v1143 = vld [vmem:[%s1142] sm:$0xff]
    %v1144 = vld [vmem:[%s1142 + $0x8] sm:$0xff]
    %v1145 = vld [vmem:[%s1142 + $0x10] sm:$0xff]
    %v1146 = vld [vmem:[%s1142 + $0x18] sm:$0xff]
    %v1147 = vld [vmem:[%s1142 + $0x20] sm:$0xff]
    %v1148 = vld [vmem:[%s1142 + $0x28] sm:$0xff]
    %v1149 = vld [vmem:[%s1142 + $0x30] sm:$0xff]
    %v1150 = vld [vmem:[%s1142 + $0x38] sm:$0xff]
    %v1152 = vsel %vm388, %v1141, 0
    %1154 = vmatprep.subr.mxu0 0.0
    %1155 = vmatpush1.msra.mxu0 %v1143
    %1156 = vmatprep.subr.mxu0 0.0
    %1157 = vmatpush1.msra.mxu0 %v1144
    %1158 = vmatprep.subr.mxu0 0.0
    %1159 = vmatpush1.msra.mxu0 %v1145
    %1160 = vmatprep.subr.mxu0 0.0
    %1161 = vmatpush1.msra.mxu0 %v1146
    %1162 = vmatprep.subr.mxu0 0.0
    %1163 = vmatpush1.msra.mxu0 %v1147
    %1164 = vmatprep.subr.mxu0 0.0
    %1165 = vmatpush1.msra.mxu0 %v1148
    %1166 = vmatprep.subr.mxu0 0.0
    %1167 = vmatpush1.msra.mxu0 %v1149
    %1168 = vmatprep.subr.mxu0 0.0
    %1169 = vmatpush1.msra.mxu0 %v1150
    %1170 = vmatprep.subr.mxu0 0.0
    %1171 = vmatpush1.msra.mxu0 0.0
    %1172 = vmatprep.subr.mxu0 0.0
    %1173 = vmatpush1.msra.mxu0 0.0
    %1174 = vmatprep.subr.mxu0 0.0
    %1175 = vmatpush1.msra.mxu0 0.0
    %1176 = vmatprep.subr.mxu0 0.0
    %1177 = vmatpush1.msra.mxu0 0.0
    %1178 = vmatprep.subr.mxu0 0.0
    %1179 = vmatpush1.msra.mxu0 0.0
    %1180 = vmatprep.subr.mxu0 0.0
    %1181 = vmatpush1.msra.mxu0 0.0
    %1182 = vmatprep.subr.mxu0 0.0
    %1183 = vmatpush1.msra.mxu0 0.0
    %1184 = vmatprep.subr.mxu0 0.0
    %1185 = vmatpush1.msra.mxu0 0.0
    %1186 = vmatprep.subr.mxu0 0.0
    %1187 = vmatpush1.msra.mxu0 0.0
    %1188 = vmatprep.subr.mxu0 0.0
    %1189 = vmatpush1.msra.mxu0 0.0
    %1190 = vmatprep.subr.mxu0 0.0
    %1191 = vmatpush1.msra.mxu0 0.0
    %1192 = vmatprep.subr.mxu0 0.0
    %1193 = vmatpush1.msra.mxu0 0.0
    %1194 = vmatprep.subr.mxu0 0.0
    %1195 = vmatpush1.msra.mxu0 0.0
    %1196 = vmatprep.subr.mxu0 0.0
    %1197 = vmatpush1.msra.mxu0 0.0
    %1198 = vmatprep.subr.mxu0 0.0
    %1199 = vmatpush1.msra.mxu0 0.0
    %1200 = vmatprep.subr.mxu0 0.0
    %1201 = vmatpush1.msra.mxu0 0.0
    %1202 = vmatprep.subr.mxu0 0.0
    %1203 = vmatpush1.msra.mxu0 0.0
    %1204 = vmatprep.subr.mxu0 0.0
    %1205 = vmatpush1.msra.mxu0 0.0
    %1206 = vmatprep.subr.mxu0 0.0
    %1207 = vmatpush1.msra.mxu0 0.0
    %1208 = vmatprep.subr.mxu0 0.0
    %1209 = vmatpush1.msra.mxu0 0.0
    %1210 = vmatprep.subr.mxu0 0.0
    %1211 = vmatpush1.msra.mxu0 0.0
    %1212 = vmatprep.subr.mxu0 0.0
    %1213 = vmatpush1.msra.mxu0 0.0
    %1214 = vmatprep.subr.mxu0 0.0
    %1215 = vmatpush1.msra.mxu0 0.0
    %1216 = vmatprep.subr.mxu0 0.0
    %1217 = vmatpush1.msra.mxu0 0.0
    %1218 = vmatprep.mubr.f32.mxu0 0.0
    %1219 = vmatmul.mubr.f32.gmra.mrb[0].mxu0 %v1152
    %v1220 = vpop.f32.mrb[0].mxu0
    %v1221 = vadd.f32 0.0, %v1220
    %v1222 = vpop.f32.mrb[0].mxu0
    %1223 = vdwg.mxu0
    %v1224 = vadd.f32 %v994, %v1221
    %s1225 = scalar_lea.vmem [#allocation2], 80
    %v1226 = vld [vmem:[%s1225] sm:$0xff]
    %1227 = vmatprep.subr.mxu0 0.0
    %1228 = vmatpush1.msra.mxu0 %v55
    %1229 = vmatprep.subr.mxu0 0.0
    %1230 = vmatpush1.msra.mxu0 %v56
    %1231 = vmatprep.subr.mxu0 0.0
    %1232 = vmatpush1.msra.mxu0 %v57
    %1233 = vmatprep.subr.mxu0 0.0
    %1234 = vmatpush1.msra.mxu0 %v58
    %1235 = vmatprep.subr.mxu0 0.0
    %1236 = vmatpush1.msra.mxu0 %v59
    %1237 = vmatprep.subr.mxu0 0.0
    %1238 = vmatpush1.msra.mxu0 %v60
    %1239 = vmatprep.subr.mxu0 0.0
    %1240 = vmatpush1.msra.mxu0 %v61
    %1241 = vmatprep.subr.mxu0 0.0
    %1242 = vmatpush1.msra.mxu0 %v62
    %1243 = vmatprep.subr.mxu0 0.0
    %1244 = vmatpush1.msra.mxu0 %v63
    %1245 = vmatprep.subr.mxu0 0.0
    %1246 = vmatpush1.msra.mxu0 %v64
    %1247 = vmatprep.subr.mxu0 0.0
    %1248 = vmatpush1.msra.mxu0 %v65
    %1249 = vmatprep.subr.mxu0 0.0
    %1250 = vmatpush1.msra.mxu0 %v66
    %1251 = vmatprep.subr.mxu0 0.0
    %1252 = vmatpush1.msra.mxu0 %v67
    %1253 = vmatprep.subr.mxu0 0.0
    %1254 = vmatpush1.msra.mxu0 %v68
    %1255 = vmatprep.subr.mxu0 0.0
    %1256 = vmatpush1.msra.mxu0 %v69
    %1257 = vmatprep.subr.mxu0 0.0
    %1258 = vmatpush1.msra.mxu0 %v70
    %1259 = vmatprep.subr.mxu0 0.0
    %1260 = vmatpush1.msra.mxu0 0.0
    %1261 = vmatprep.subr.mxu0 0.0
    %1262 = vmatpush1.msra.mxu0 0.0
    %1263 = vmatprep.subr.mxu0 0.0
    %1264 = vmatpush1.msra.mxu0 0.0
    %1265 = vmatprep.subr.mxu0 0.0
    %1266 = vmatpush1.msra.mxu0 0.0
    %1267 = vmatprep.subr.mxu0 0.0
    %1268 = vmatpush1.msra.mxu0 0.0
    %1269 = vmatprep.subr.mxu0 0.0
    %1270 = vmatpush1.msra.mxu0 0.0
    %1271 = vmatprep.subr.mxu0 0.0
    %1272 = vmatpush1.msra.mxu0 0.0
    %1273 = vmatprep.subr.mxu0 0.0
    %1274 = vmatpush1.msra.mxu0 0.0
    %1275 = vmatprep.subr.mxu0 0.0
    %1276 = vmatpush1.msra.mxu0 0.0
    %1277 = vmatprep.subr.mxu0 0.0
    %1278 = vmatpush1.msra.mxu0 0.0
    %1279 = vmatprep.subr.mxu0 0.0
    %1280 = vmatpush1.msra.mxu0 0.0
    %1281 = vmatprep.subr.mxu0 0.0
    %1282 = vmatpush1.msra.mxu0 0.0
    %1283 = vmatprep.subr.mxu0 0.0
    %1284 = vmatpush1.msra.mxu0 0.0
    %1285 = vmatprep.subr.mxu0 0.0
    %1286 = vmatpush1.msra.mxu0 0.0
    %1287 = vmatprep.subr.mxu0 0.0
    %1288 = vmatpush1.msra.mxu0 0.0
    %1289 = vmatprep.subr.mxu0 0.0
    %1290 = vmatpush1.msra.mxu0 0.0
    %1291 = vmatprep.mubr.f32.mxu0 0.0
    %1292 = vmatmul.mubr.f32.gmra.mrb[0].mxu0 %v1226
    %v1293 = vpop.f32.mrb[0].mxu0
    %v1294 = vadd.f32 0.0, %v1293
    %v1295 = vpop.f32.mrb[0].mxu0
    %1296 = vdwg.mxu0
    %s1297 = scalar_lea.vmem [#allocation2], 88
    %v1298 = vld [vmem:[%s1297] sm:$0xff]
    %1299 = vmatprep.subr.mxu0 0.0
    %1300 = vmatpush1.msra.mxu0 %v55
    %1301 = vmatprep.subr.mxu0 0.0
    %1302 = vmatpush1.msra.mxu0 %v56
    %1303 = vmatprep.subr.mxu0 0.0
    %1304 = vmatpush1.msra.mxu0 %v57
    %1305 = vmatprep.subr.mxu0 0.0
    %1306 = vmatpush1.msra.mxu0 %v58
    %1307 = vmatprep.subr.mxu0 0.0
    %1308 = vmatpush1.msra.mxu0 %v59
    %1309 = vmatprep.subr.mxu0 0.0
    %1310 = vmatpush1.msra.mxu0 %v60
    %1311 = vmatprep.subr.mxu0 0.0
    %1312 = vmatpush1.msra.mxu0 %v61
    %1313 = vmatprep.subr.mxu0 0.0
    %1314 = vmatpush1.msra.mxu0 %v62
    %1315 = vmatprep.subr.mxu0 0.0
    %1316 = vmatpush1.msra.mxu0 %v63
    %1317 = vmatprep.subr.mxu0 0.0
    %1318 = vmatpush1.msra.mxu0 %v64
    %1319 = vmatprep.subr.mxu0 0.0
    %1320 = vmatpush1.msra.mxu0 %v65
    %1321 = vmatprep.subr.mxu0 0.0
    %1322 = vmatpush1.msra.mxu0 %v66
    %1323 = vmatprep.subr.mxu0 0.0
    %1324 = vmatpush1.msra.mxu0 %v67
    %1325 = vmatprep.subr.mxu0 0.0
    %1326 = vmatpush1.msra.mxu0 %v68
    %1327 = vmatprep.subr.mxu0 0.0
    %1328 = vmatpush1.msra.mxu0 %v69
    %1329 = vmatprep.subr.mxu0 0.0
    %1330 = vmatpush1.msra.mxu0 %v70
    %1331 = vmatprep.subr.mxu0 0.0
    %1332 = vmatpush1.msra.mxu0 0.0
    %1333 = vmatprep.subr.mxu0 0.0
    %1334 = vmatpush1.msra.mxu0 0.0
    %1335 = vmatprep.subr.mxu0 0.0
    %1336 = vmatpush1.msra.mxu0 0.0
    %1337 = vmatprep.subr.mxu0 0.0
    %1338 = vmatpush1.msra.mxu0 0.0
    %1339 = vmatprep.subr.mxu0 0.0
    %1340 = vmatpush1.msra.mxu0 0.0
    %1341 = vmatprep.subr.mxu0 0.0
    %1342 = vmatpush1.msra.mxu0 0.0
    %1343 = vmatprep.subr.mxu0 0.0
    %1344 = vmatpush1.msra.mxu0 0.0
    %1345 = vmatprep.subr.mxu0 0.0
    %1346 = vmatpush1.msra.mxu0 0.0
    %1347 = vmatprep.subr.mxu0 0.0
    %1348 = vmatpush1.msra.mxu0 0.0
    %1349 = vmatprep.subr.mxu0 0.0
    %1350 = vmatpush1.msra.mxu0 0.0
    %1351 = vmatprep.subr.mxu0 0.0
    %1352 = vmatpush1.msra.mxu0 0.0
    %1353 = vmatprep.subr.mxu0 0.0
    %1354 = vmatpush1.msra.mxu0 0.0
    %1355 = vmatprep.subr.mxu0 0.0
    %1356 = vmatpush1.msra.mxu0 0.0
    %1357 = vmatprep.subr.mxu0 0.0
    %1358 = vmatpush1.msra.mxu0 0.0
    %1359 = vmatprep.subr.mxu0 0.0
    %1360 = vmatpush1.msra.mxu0 0.0
    %1361 = vmatprep.subr.mxu0 0.0
    %1362 = vmatpush1.msra.mxu0 0.0
    %1363 = vmatprep.mubr.f32.mxu0 0.0
    %1364 = vmatmul.mubr.f32.gmra.mrb[0].mxu0 %v1298
    %v1365 = vpop.f32.mrb[0].mxu0
    %v1366 = vadd.f32 0.0, %v1365
    %v1367 = vpop.f32.mrb[0].mxu0
    %1368 = vdwg.mxu0
    %v1369 = vmax.f32 %v1294, %v1366
    %v1370 = vadd.f32 %v1369, %v220
    %v1371 = vmax.f32 %v1370, 0.0
    %s1372 = scalar_lea.vmem [#allocation5], 320
    %v1373 = vld [vmem:[%s1372] sm:$0xff]
    %v1374 = vld [vmem:[%s1372 + $0x8] sm:$0xff]
    %v1375 = vld [vmem:[%s1372 + $0x10] sm:$0xff]
    %v1376 = vld [vmem:[%s1372 + $0x18] sm:$0xff]
    %v1377 = vld [vmem:[%s1372 + $0x20] sm:$0xff]
    %v1378 = vld [vmem:[%s1372 + $0x28] sm:$0xff]
    %v1379 = vld [vmem:[%s1372 + $0x30] sm:$0xff]
    %v1380 = vld [vmem:[%s1372 + $0x38] sm:$0xff]
    %v1382 = vsel %vm388, %v1371, 0
    %1384 = vmatprep.subr.mxu0 0.0
    %1385 = vmatpush1.msra.mxu0 %v1373
    %1386 = vmatprep.subr.mxu0 0.0
    %1387 = vmatpush1.msra.mxu0 %v1374
    %1388 = vmatprep.subr.mxu0 0.0
    %1389 = vmatpush1.msra.mxu0 %v1375
    %1390 = vmatprep.subr.mxu0 0.0
    %1391 = vmatpush1.msra.mxu0 %v1376
    %1392 = vmatprep.subr.mxu0 0.0
    %1393 = vmatpush1.msra.mxu0 %v1377
    %1394 = vmatprep.subr.mxu0 0.0
    %1395 = vmatpush1.msra.mxu0 %v1378
    %1396 = vmatprep.subr.mxu0 0.0
    %1397 = vmatpush1.msra.mxu0 %v1379
    %1398 = vmatprep.subr.mxu0 0.0
    %1399 = vmatpush1.msra.mxu0 %v1380
    %1400 = vmatprep.subr.mxu0 0.0
    %1401 = vmatpush1.msra.mxu0 0.0
    %1402 = vmatprep.subr.mxu0 0.0
    %1403 = vmatpush1.msra.mxu0 0.0
    %1404 = vmatprep.subr.mxu0 0.0
    %1405 = vmatpush1.msra.mxu0 0.0
    %1406 = vmatprep.subr.mxu0 0.0
    %1407 = vmatpush1.msra.mxu0 0.0
    %1408 = vmatprep.subr.mxu0 0.0
    %1409 = vmatpush1.msra.mxu0 0.0
    %1410 = vmatprep.subr.mxu0 0.0
    %1411 = vmatpush1.msra.mxu0 0.0
    %1412 = vmatprep.subr.mxu0 0.0
    %1413 = vmatpush1.msra.mxu0 0.0
    %1414 = vmatprep.subr.mxu0 0.0
    %1415 = vmatpush1.msra.mxu0 0.0
    %1416 = vmatprep.subr.mxu0 0.0
    %1417 = vmatpush1.msra.mxu0 0.0
    %1418 = vmatprep.subr.mxu0 0.0
    %1419 = vmatpush1.msra.mxu0 0.0
    %1420 = vmatprep.subr.mxu0 0.0
    %1421 = vmatpush1.msra.mxu0 0.0
    %1422 = vmatprep.subr.mxu0 0.0
    %1423 = vmatpush1.msra.mxu0 0.0
    %1424 = vmatprep.subr.mxu0 0.0
    %1425 = vmatpush1.msra.mxu0 0.0
    %1426 = vmatprep.subr.mxu0 0.0
    %1427 = vmatpush1.msra.mxu0 0.0
    %1428 = vmatprep.subr.mxu0 0.0
    %1429 = vmatpush1.msra.mxu0 0.0
    %1430 = vmatprep.subr.mxu0 0.0
    %1431 = vmatpush1.msra.mxu0 0.0
    %1432 = vmatprep.subr.mxu0 0.0
    %1433 = vmatpush1.msra.mxu0 0.0
    %1434 = vmatprep.subr.mxu0 0.0
    %1435 = vmatpush1.msra.mxu0 0.0
    %1436 = vmatprep.subr.mxu0 0.0
    %1437 = vmatpush1.msra.mxu0 0.0
    %1438 = vmatprep.subr.mxu0 0.0
    %1439 = vmatpush1.msra.mxu0 0.0
    %1440 = vmatprep.subr.mxu0 0.0
    %1441 = vmatpush1.msra.mxu0 0.0
    %1442 = vmatprep.subr.mxu0 0.0
    %1443 = vmatpush1.msra.mxu0 0.0
    %1444 = vmatprep.subr.mxu0 0.0
    %1445 = vmatpush1.msra.mxu0 0.0
    %1446 = vmatprep.subr.mxu0 0.0
    %1447 = vmatpush1.msra.mxu0 0.0
    %1448 = vmatprep.mubr.f32.mxu0 0.0
    %1449 = vmatmul.mubr.f32.gmra.mrb[0].mxu0 %v1382
    %v1450 = vpop.f32.mrb[0].mxu0
    %v1451 = vadd.f32 0.0, %v1450
    %v1452 = vpop.f32.mrb[0].mxu0
    %1453 = vdwg.mxu0
    %v1454 = vadd.f32 %v1224, %v1451
    %s1455 = scalar_lea.vmem [#allocation2], 96
    %v1456 = vld [vmem:[%s1455] sm:$0xff]
    %1457 = vmatprep.subr.mxu0 0.0
    %1458 = vmatpush1.msra.mxu0 %v55
    %1459 = vmatprep.subr.mxu0 0.0
    %1460 = vmatpush1.msra.mxu0 %v56
    %1461 = vmatprep.subr.mxu0 0.0
    %1462 = vmatpush1.msra.mxu0 %v57
    %1463 = vmatprep.subr.mxu0 0.0
    %1464 = vmatpush1.msra.mxu0 %v58
    %1465 = vmatprep.subr.mxu0 0.0
    %1466 = vmatpush1.msra.mxu0 %v59
    %1467 = vmatprep.subr.mxu0 0.0
    %1468 = vmatpush1.msra.mxu0 %v60
    %1469 = vmatprep.subr.mxu0 0.0
    %1470 = vmatpush1.msra.mxu0 %v61
    %1471 = vmatprep.subr.mxu0 0.0
    %1472 = vmatpush1.msra.mxu0 %v62
    %1473 = vmatprep.subr.mxu0 0.0
    %1474 = vmatpush1.msra.mxu0 %v63
    %1475 = vmatprep.subr.mxu0 0.0
    %1476 = vmatpush1.msra.mxu0 %v64
    %1477 = vmatprep.subr.mxu0 0.0
    %1478 = vmatpush1.msra.mxu0 %v65
    %1479 = vmatprep.subr.mxu0 0.0
    %1480 = vmatpush1.msra.mxu0 %v66
    %1481 = vmatprep.subr.mxu0 0.0
    %1482 = vmatpush1.msra.mxu0 %v67
    %1483 = vmatprep.subr.mxu0 0.0
    %1484 = vmatpush1.msra.mxu0 %v68
    %1485 = vmatprep.subr.mxu0 0.0
    %1486 = vmatpush1.msra.mxu0 %v69
    %1487 = vmatprep.subr.mxu0 0.0
    %1488 = vmatpush1.msra.mxu0 %v70
    %1489 = vmatprep.subr.mxu0 0.0
    %1490 = vmatpush1.msra.mxu0 0.0
    %1491 = vmatprep.subr.mxu0 0.0
    %1492 = vmatpush1.msra.mxu0 0.0
    %1493 = vmatprep.subr.mxu0 0.0
    %1494 = vmatpush1.msra.mxu0 0.0
    %1495 = vmatprep.subr.mxu0 0.0
    %1496 = vmatpush1.msra.mxu0 0.0
    %1497 = vmatprep.subr.mxu0 0.0
    %1498 = vmatpush1.msra.mxu0 0.0
    %1499 = vmatprep.subr.mxu0 0.0
    %1500 = vmatpush1.msra.mxu0 0.0
    %1501 = vmatprep.subr.mxu0 0.0
    %1502 = vmatpush1.msra.mxu0 0.0
    %1503 = vmatprep.subr.mxu0 0.0
    %1504 = vmatpush1.msra.mxu0 0.0
    %1505 = vmatprep.subr.mxu0 0.0
    %1506 = vmatpush1.msra.mxu0 0.0
    %1507 = vmatprep.subr.mxu0 0.0
    %1508 = vmatpush1.msra.mxu0 0.0
    %1509 = vmatprep.subr.mxu0 0.0
    %1510 = vmatpush1.msra.mxu0 0.0
    %1511 = vmatprep.subr.mxu0 0.0
    %1512 = vmatpush1.msra.mxu0 0.0
    %1513 = vmatprep.subr.mxu0 0.0
    %1514 = vmatpush1.msra.mxu0 0.0
    %1515 = vmatprep.subr.mxu0 0.0
    %1516 = vmatpush1.msra.mxu0 0.0
    %1517 = vmatprep.subr.mxu0 0.0
    %1518 = vmatpush1.msra.mxu0 0.0
    %1519 = vmatprep.subr.mxu0 0.0
    %1520 = vmatpush1.msra.mxu0 0.0
    %1521 = vmatprep.mubr.f32.mxu0 0.0
    %1522 = vmatmul.mubr.f32.gmra.mrb[0].mxu0 %v1456
    %v1523 = vpop.f32.mrb[0].mxu0
    %v1524 = vadd.f32 0.0, %v1523
    %v1525 = vpop.f32.mrb[0].mxu0
    %1526 = vdwg.mxu0
    %s1527 = scalar_lea.vmem [#allocation2], 104
    %v1528 = vld [vmem:[%s1527] sm:$0xff]
    %1529 = vmatprep.subr.mxu0 0.0
    %1530 = vmatpush1.msra.mxu0 %v55
    %1531 = vmatprep.subr.mxu0 0.0
    %1532 = vmatpush1.msra.mxu0 %v56
    %1533 = vmatprep.subr.mxu0 0.0
    %1534 = vmatpush1.msra.mxu0 %v57
    %1535 = vmatprep.subr.mxu0 0.0
    %1536 = vmatpush1.msra.mxu0 %v58
    %1537 = vmatprep.subr.mxu0 0.0
    %1538 = vmatpush1.msra.mxu0 %v59
    %1539 = vmatprep.subr.mxu0 0.0
    %1540 = vmatpush1.msra.mxu0 %v60
    %1541 = vmatprep.subr.mxu0 0.0
    %1542 = vmatpush1.msra.mxu0 %v61
    %1543 = vmatprep.subr.mxu0 0.0
    %1544 = vmatpush1.msra.mxu0 %v62
    %1545 = vmatprep.subr.mxu0 0.0
    %1546 = vmatpush1.msra.mxu0 %v63
    %1547 = vmatprep.subr.mxu0 0.0
    %1548 = vmatpush1.msra.mxu0 %v64
    %1549 = vmatprep.subr.mxu0 0.0
    %1550 = vmatpush1.msra.mxu0 %v65
    %1551 = vmatprep.subr.mxu0 0.0
    %1552 = vmatpush1.msra.mxu0 %v66
    %1553 = vmatprep.subr.mxu0 0.0
    %1554 = vmatpush1.msra.mxu0 %v67
    %1555 = vmatprep.subr.mxu0 0.0
    %1556 = vmatpush1.msra.mxu0 %v68
    %1557 = vmatprep.subr.mxu0 0.0
    %1558 = vmatpush1.msra.mxu0 %v69
    %1559 = vmatprep.subr.mxu0 0.0
    %1560 = vmatpush1.msra.mxu0 %v70
    %1561 = vmatprep.subr.mxu0 0.0
    %1562 = vmatpush1.msra.mxu0 0.0
    %1563 = vmatprep.subr.mxu0 0.0
    %1564 = vmatpush1.msra.mxu0 0.0
    %1565 = vmatprep.subr.mxu0 0.0
    %1566 = vmatpush1.msra.mxu0 0.0
    %1567 = vmatprep.subr.mxu0 0.0
    %1568 = vmatpush1.msra.mxu0 0.0
    %1569 = vmatprep.subr.mxu0 0.0
    %1570 = vmatpush1.msra.mxu0 0.0
    %1571 = vmatprep.subr.mxu0 0.0
    %1572 = vmatpush1.msra.mxu0 0.0
    %1573 = vmatprep.subr.mxu0 0.0
    %1574 = vmatpush1.msra.mxu0 0.0
    %1575 = vmatprep.subr.mxu0 0.0
    %1576 = vmatpush1.msra.mxu0 0.0
    %1577 = vmatprep.subr.mxu0 0.0
    %1578 = vmatpush1.msra.mxu0 0.0
    %1579 = vmatprep.subr.mxu0 0.0
    %1580 = vmatpush1.msra.mxu0 0.0
    %1581 = vmatprep.subr.mxu0 0.0
    %1582 = vmatpush1.msra.mxu0 0.0
    %1583 = vmatprep.subr.mxu0 0.0
    %1584 = vmatpush1.msra.mxu0 0.0
    %1585 = vmatprep.subr.mxu0 0.0
    %1586 = vmatpush1.msra.mxu0 0.0
    %1587 = vmatprep.subr.mxu0 0.0
    %1588 = vmatpush1.msra.mxu0 0.0
    %1589 = vmatprep.subr.mxu0 0.0
    %1590 = vmatpush1.msra.mxu0 0.0
    %1591 = vmatprep.subr.mxu0 0.0
    %1592 = vmatpush1.msra.mxu0 0.0
    %1593 = vmatprep.mubr.f32.mxu0 0.0
    %1594 = vmatmul.mubr.f32.gmra.mrb[0].mxu0 %v1528
    %v1595 = vpop.f32.mrb[0].mxu0
    %v1596 = vadd.f32 0.0, %v1595
    %v1597 = vpop.f32.mrb[0].mxu0
    %1598 = vdwg.mxu0
    %v1599 = vmax.f32 %v1524, %v1596
    %v1600 = vadd.f32 %v1599, %v220
    %v1601 = vmax.f32 %v1600, 0.0
    %s1602 = scalar_lea.vmem [#allocation5], 384
    %v1603 = vld [vmem:[%s1602] sm:$0xff]
    %v1604 = vld [vmem:[%s1602 + $0x8] sm:$0xff]
    %v1605 = vld [vmem:[%s1602 + $0x10] sm:$0xff]
    %v1606 = vld [vmem:[%s1602 + $0x18] sm:$0xff]
    %v1607 = vld [vmem:[%s1602 + $0x20] sm:$0xff]
    %v1608 = vld [vmem:[%s1602 + $0x28] sm:$0xff]
    %v1609 = vld [vmem:[%s1602 + $0x30] sm:$0xff]
    %v1610 = vld [vmem:[%s1602 + $0x38] sm:$0xff]
    %v1612 = vsel %vm388, %v1601, 0
    %1614 = vmatprep.subr.mxu0 0.0
    %1615 = vmatpush1.msra.mxu0 %v1603
    %1616 = vmatprep.subr.mxu0 0.0
    %1617 = vmatpush1.msra.mxu0 %v1604
    %1618 = vmatprep.subr.mxu0 0.0
    %1619 = vmatpush1.msra.mxu0 %v1605
    %1620 = vmatprep.subr.mxu0 0.0
    %1621 = vmatpush1.msra.mxu0 %v1606
    %1622 = vmatprep.subr.mxu0 0.0
    %1623 = vmatpush1.msra.mxu0 %v1607
    %1624 = vmatprep.subr.mxu0 0.0
    %1625 = vmatpush1.msra.mxu0 %v1608
    %1626 = vmatprep.subr.mxu0 0.0
    %1627 = vmatpush1.msra.mxu0 %v1609
    %1628 = vmatprep.subr.mxu0 0.0
    %1629 = vmatpush1.msra.mxu0 %v1610
    %1630 = vmatprep.subr.mxu0 0.0
    %1631 = vmatpush1.msra.mxu0 0.0
    %1632 = vmatprep.subr.mxu0 0.0
    %1633 = vmatpush1.msra.mxu0 0.0
    %1634 = vmatprep.subr.mxu0 0.0
    %1635 = vmatpush1.msra.mxu0 0.0
    %1636 = vmatprep.subr.mxu0 0.0
    %1637 = vmatpush1.msra.mxu0 0.0
    %1638 = vmatprep.subr.mxu0 0.0
    %1639 = vmatpush1.msra.mxu0 0.0
    %1640 = vmatprep.subr.mxu0 0.0
    %1641 = vmatpush1.msra.mxu0 0.0
    %1642 = vmatprep.subr.mxu0 0.0
    %1643 = vmatpush1.msra.mxu0 0.0
    %1644 = vmatprep.subr.mxu0 0.0
    %1645 = vmatpush1.msra.mxu0 0.0
    %1646 = vmatprep.subr.mxu0 0.0
    %1647 = vmatpush1.msra.mxu0 0.0
    %1648 = vmatprep.subr.mxu0 0.0
    %1649 = vmatpush1.msra.mxu0 0.0
    %1650 = vmatprep.subr.mxu0 0.0
    %1651 = vmatpush1.msra.mxu0 0.0
    %1652 = vmatprep.subr.mxu0 0.0
    %1653 = vmatpush1.msra.mxu0 0.0
    %1654 = vmatprep.subr.mxu0 0.0
    %1655 = vmatpush1.msra.mxu0 0.0
    %1656 = vmatprep.subr.mxu0 0.0
    %1657 = vmatpush1.msra.mxu0 0.0
    %1658 = vmatprep.subr.mxu0 0.0
    %1659 = vmatpush1.msra.mxu0 0.0
    %1660 = vmatprep.subr.mxu0 0.0
    %1661 = vmatpush1.msra.mxu0 0.0
    %1662 = vmatprep.subr.mxu0 0.0
    %1663 = vmatpush1.msra.mxu0 0.0
    %1664 = vmatprep.subr.mxu0 0.0
    %1665 = vmatpush1.msra.mxu0 0.0
    %1666 = vmatprep.subr.mxu0 0.0
    %1667 = vmatpush1.msra.mxu0 0.0
    %1668 = vmatprep.subr.mxu0 0.0
    %1669 = vmatpush1.msra.mxu0 0.0
    %1670 = vmatprep.subr.mxu0 0.0
    %1671 = vmatpush1.msra.mxu0 0.0
    %1672 = vmatprep.subr.mxu0 0.0
    %1673 = vmatpush1.msra.mxu0 0.0
    %1674 = vmatprep.subr.mxu0 0.0
    %1675 = vmatpush1.msra.mxu0 0.0
    %1676 = vmatprep.subr.mxu0 0.0
    %1677 = vmatpush1.msra.mxu0 0.0
    %1678 = vmatprep.mubr.f32.mxu0 0.0
    %1679 = vmatmul.mubr.f32.gmra.mrb[0].mxu0 %v1612
    %v1680 = vpop.f32.mrb[0].mxu0
    %v1681 = vadd.f32 0.0, %v1680
    %v1682 = vpop.f32.mrb[0].mxu0
    %1683 = vdwg.mxu0
    %v1684 = vadd.f32 %v1454, %v1681
    %v1685 = vld [vmem:[%s4] sm:$0x1]
    %v1687 = vlaneseq
    %v1688 = vshrl.u32 %v1687, 7
    %v1689 = vsub.s32 0, %v1688
    %v1690 = vrot.slane %v1685, %v1689
    %v1692 = vadd.f32 %v1684, %v1690
    %v1693 = vmax.f32 %v1692, 0.0
    %v1694 = vld [vmem:[%s5] sm:$0xff]
    %v1695 = vld [vmem:[%s5 + $0x8] sm:$0xff]
    %v1696 = vld [vmem:[%s5 + $0x10] sm:$0xff]
    %v1697 = vld [vmem:[%s5 + $0x18] sm:$0xff]
    %v1698 = vld [vmem:[%s5 + $0x20] sm:$0xff]
    %v1699 = vld [vmem:[%s5 + $0x28] sm:$0xff]
    %v1700 = vld [vmem:[%s5 + $0x30] sm:$0xff]
    %v1701 = vld [vmem:[%s5 + $0x38] sm:$0xff]
    %v1702 = vld [vmem:[%s5 + $0x40] sm:$0xff]
    %v1703 = vld [vmem:[%s5 + $0x48] sm:$0xff]
    %v1704 = vld [vmem:[%s5 + $0x50] sm:$0xff]
    %v1705 = vld [vmem:[%s5 + $0x58] sm:$0xff]
    %v1706 = vld [vmem:[%s5 + $0x60] sm:$0xff]
    %v1707 = vld [vmem:[%s5 + $0x68] sm:$0xff]
    %v1708 = vld [vmem:[%s5 + $0x70] sm:$0xff]
    %v1709 = vld [vmem:[%s5 + $0x78] sm:$0xff]
    %v1710 = vld [vmem:[%s6] sm:$0x1]
    %v1712 = vlaneseq
    %v1713 = vshrl.u32 %v1712, 7
    %v1714 = vsub.s32 0, %v1713
    %v1715 = vrot.slane %v1710, %v1714
    %1717 = vmatprep.subr.mxu0 0.0
    %1718 = vmatpush1.msra.mxu0 %v1694
    %1719 = vmatprep.subr.mxu0 0.0
    %1720 = vmatpush1.msra.mxu0 %v1695
    %1721 = vmatprep.subr.mxu0 0.0
    %1722 = vmatpush1.msra.mxu0 %v1696
    %1723 = vmatprep.subr.mxu0 0.0
    %1724 = vmatpush1.msra.mxu0 %v1697
    %1725 = vmatprep.subr.mxu0 0.0
    %1726 = vmatpush1.msra.mxu0 %v1698
    %1727 = vmatprep.subr.mxu0 0.0
    %1728 = vmatpush1.msra.mxu0 %v1699
    %1729 = vmatprep.subr.mxu0 0.0
    %1730 = vmatpush1.msra.mxu0 %v1700
    %1731 = vmatprep.subr.mxu0 0.0
    %1732 = vmatpush1.msra.mxu0 %v1701
    %1733 = vmatprep.subr.mxu0 0.0
    %1734 = vmatpush1.msra.mxu0 %v1702
    %1735 = vmatprep.subr.mxu0 0.0
    %1736 = vmatpush1.msra.mxu0 %v1703
    %1737 = vmatprep.subr.mxu0 0.0
    %1738 = vmatpush1.msra.mxu0 %v1704
    %1739 = vmatprep.subr.mxu0 0.0
    %1740 = vmatpush1.msra.mxu0 %v1705
    %1741 = vmatprep.subr.mxu0 0.0
    %1742 = vmatpush1.msra.mxu0 %v1706
    %1743 = vmatprep.subr.mxu0 0.0
    %1744 = vmatpush1.msra.mxu0 %v1707
    %1745 = vmatprep.subr.mxu0 0.0
    %1746 = vmatpush1.msra.mxu0 %v1708
    %1747 = vmatprep.subr.mxu0 0.0
    %1748 = vmatpush1.msra.mxu0 %v1709
    %1749 = vmatprep.subr.mxu0 0.0
    %1750 = vmatpush1.msra.mxu0 0.0
    %1751 = vmatprep.subr.mxu0 0.0
    %1752 = vmatpush1.msra.mxu0 0.0
    %1753 = vmatprep.subr.mxu0 0.0
    %1754 = vmatpush1.msra.mxu0 0.0
    %1755 = vmatprep.subr.mxu0 0.0
    %1756 = vmatpush1.msra.mxu0 0.0
    %1757 = vmatprep.subr.mxu0 0.0
    %1758 = vmatpush1.msra.mxu0 0.0
    %1759 = vmatprep.subr.mxu0 0.0
    %1760 = vmatpush1.msra.mxu0 0.0
    %1761 = vmatprep.subr.mxu0 0.0
    %1762 = vmatpush1.msra.mxu0 0.0
    %1763 = vmatprep.subr.mxu0 0.0
    %1764 = vmatpush1.msra.mxu0 0.0
    %1765 = vmatprep.subr.mxu0 0.0
    %1766 = vmatpush1.msra.mxu0 0.0
    %1767 = vmatprep.subr.mxu0 0.0
    %1768 = vmatpush1.msra.mxu0 0.0
    %1769 = vmatprep.subr.mxu0 0.0
    %1770 = vmatpush1.msra.mxu0 0.0
    %1771 = vmatprep.subr.mxu0 0.0
    %1772 = vmatpush1.msra.mxu0 0.0
    %1773 = vmatprep.subr.mxu0 0.0
    %1774 = vmatpush1.msra.mxu0 0.0
    %1775 = vmatprep.subr.mxu0 0.0
    %1776 = vmatpush1.msra.mxu0 0.0
    %1777 = vmatprep.subr.mxu0 0.0
    %1778 = vmatpush1.msra.mxu0 0.0
    %1779 = vmatprep.subr.mxu0 0.0
    %1780 = vmatpush1.msra.mxu0 0.0
    %1781 = vmatprep.mubr.f32.mxu0 0.0
    %1782 = vmatmul.mubr.f32.gmra.mrb[0].mxu0 %v1693
    %v1783 = vpop.f32.mrb[0].mxu0
    %v1784 = vadd.f32 %v1715, %v1783
    %v1785 = vpop.f32.mrb[0].mxu0
    %1786 = vdwg.mxu0
    %1787 = vst [vmem:[#allocation7] sm:$0xff] %v1784
    // Predicated region
    $region38: #{tpu_custom_call.1} parent=1 // pred_check
      _
    $region39: #{tpu_custom_call.1} parent=1 // pred_check_branch
      %1789 = sbr.rel (0) target = $region41
    $region40: #{tpu_custom_call.1} parent=1 // pred_region
      %s1791 = ssub.s32 128, 128
      %1792 = vsyncadd [#allocation4], %s1791
      %s1794 = sshll.u32 [#allocation7], 4
      %s1795 = int_to_ptr.vmem [resolvable:$true] %s1794
      %1797 = dma.vmem_to_hbm [thread:$0]  %s1795, 128, %s7, [#allocation4]
    $region41: #{tpu_custom_call.1} parent=1 // pred_fallthru
      _
    // Predicated region
    $region42: #{tpu_custom_call.1} parent=1 // pred_check
      _
    $region43: #{tpu_custom_call.1} parent=1 // pred_check_branch
      %1799 = sbr.rel (0) target = $region45
    $region44: #{tpu_custom_call.1} parent=1 // pred_region
      %1800 = dma.done [#allocation4], 128
    $region45: #{tpu_custom_call.1} parent=1 // pred_fallthru
      _
    %1801 = vsyncpa [#allocation3], 1
    %1802 = vsyncpa [#allocation6], 1
    %1803 = vsyncpa [#allocation4], 1

</llo_original>
